<compile_context>
chip_gen: v7x
topology: tpu7x:2x2x1
jax: 0.10.0
libtpu: 0.0.40
codegen_flags: <defaults>
</compile_context>

<pallas_src>
import numpy as np
import jax
import jax.numpy as jnp
from jax import lax
from jax.experimental import pallas as pl
from jax.experimental.pallas import tpu as pltpu

BN_EPS = 1e-5  # PyTorch BatchNorm2d default eps


def _round_up(x, m):
    return ((x + m - 1) // m) * m


# ----------------------------------------------------------------------------
# Kernel factory (static shape params are closed over).
#   x_ref    : (1, T_lay*Ci_pad, Lp)  bf16  rows=(t,c) t-major, lanes=(n_in_tile, v)
#   abig_ref : (S, Lp, Lp)            bf16  block-diag kron(I_Nb, A_norm_s), zero-padded
#   w1_ref   : (C_out, (S+1)*Ci_pad)  bf16  [down | gcn_0..gcn_{S-1}] 1x1 convs, BN folded
#   w2_ref   : (C_out, K*Co_pad+Ci_pad) bf16 [tcn tap_0..tap_{K-1} | residual], BN folded
#   bias_ref : (C_out, 2)             f32   [:,0]=pre-relu bias, [:,1]=post-tcn bias
#   out_ref  : (1, Tt*C_out, Lp)      bf16  rows=(t,o) t-major for this T tile
#   mix_ref  : (S, Tw*Ci_pad, Lp)     bf16  scratch: graph-mixed x for the haloed window
#   g_ref    : (Tw*Co_pad, Lp)        f32   scratch: phase-1 (gcn) output, zero halo
# ----------------------------------------------------------------------------
def _make_kernel(*, S, K, T, Tt, Tw, pad, C_out, Ci_pad, Co_pad, Lp):
    f32 = jnp.float32
    bf16 = jnp.bfloat16

    def kernel(x_ref, abig_ref, w1_ref, w2_ref, bias_ref, out_ref, mix_ref, g_ref):
        t0 = pl.program_id(1) * Tt                     # layout-time start of this tile

        # Hoisted small loads / bias broadcasts (never re-materialized in the loops).
        w1 = w1_ref[...]                               # (C_out, (S+1)*Ci_pad)
        w2 = w2_ref[...]                               # (C_out, K*Co_pad + Ci_pad)
        b_pre = jnp.broadcast_to(bias_ref[:, 0:1], (C_out, Lp))
        b_post = jnp.broadcast_to(bias_ref[:, 1:2], (C_out, Lp))

        # Phase 0: graph mix for the whole haloed window -> VMEM scratch (lane-dense MXU
        # matmuls with contraction Lp = 128).
        row0 = pl.multiple_of(t0 * Ci_pad, Ci_pad)
        x_win = x_ref[0, pl.ds(row0, Tw * Ci_pad), :]  # (Tw*Ci_pad, Lp) bf16
        for s in range(S):
            mix_ref[s] = jnp.dot(x_win, abig_ref[s],
                                 preferred_element_type=f32).astype(bf16)

        if Co_pad != C_out:                            # keep padded scratch rows exactly 0
            g_ref[...] = jnp.zeros_like(g_ref)

        # Phase 1 (unit_gcn): one deep-contraction dot per time step, bias, relu,
        # streamed into the zero-haloed f32 scratch.
        def p1_body(i, carry):
            base_x = pl.multiple_of((t0 + i) * Ci_pad, Ci_pad)
            base_m = pl.multiple_of(i * Ci_pad, Ci_pad)
            chunks = [x_ref[0, pl.ds(base_x, Ci_pad), :]]
            for s in range(S):
                chunks.append(mix_ref[s, pl.ds(base_m, Ci_pad), :])
            op = jnp.concatenate(chunks, axis=0)       # ((S+1)*Ci_pad, Lp) bf16
            acc = jnp.dot(w1, op, preferred_element_type=f32)
            g = jnp.maximum(acc + b_pre, 0.0)
            lt = t0 + i                                # layout time index
            valid = jnp.logical_and(lt >= pad, lt < T + pad)
            g = jnp.where(valid, g, 0.0)               # conv-style zero padding of g
            g_ref[pl.ds(pl.multiple_of(i * Co_pad, Co_pad), C_out), :] = g
            return carry

        lax.fori_loop(0, Tw, p1_body, 0)

        # Phase 2 (unit_tcn + residual): one fused dot per output time step
        # (K taps + residual concatenated along the contraction), bias, relu, store.
        def p2_body(j, carry):
            base_g = pl.multiple_of(j * Co_pad, Co_pad)
            win = g_ref[pl.ds(base_g, K * Co_pad), :].astype(bf16)
            base_x = pl.multiple_of((t0 + pad + j) * Ci_pad, Ci_pad)
            xres = x_ref[0, pl.ds(base_x, Ci_pad), :]
            op = jnp.concatenate([win, xres], axis=0)  # (K*Co_pad + Ci_pad, Lp) bf16
            acc = jnp.dot(w2, op, preferred_element_type=f32)
            y = jnp.maximum(acc + b_post, 0.0)
            out_ref[0, pl.ds(j * C_out, C_out), :] = y.astype(out_ref.dtype)
            return carry

        lax.fori_loop(0, Tt, p2_body, 0)

    return kernel


# ----------------------------------------------------------------------------
# Wrapper: BN folding, adjacency normalization, lane/time/channel padding, pallas_call.
# ----------------------------------------------------------------------------
def tcn_gcn_unit_forward(x, p, stride=1, residual=True):
    assert stride == 1  # TODO(synk): stride > 1 not implemented
    N, C_in, T, V = x.shape
    S, C_out, _ = p["Wg"].shape
    K = p["Wt"].shape[-1]
    pad = (K - 1) // 2
    f32, bf16 = jnp.float32, jnp.bfloat16

    # --- eval-mode BN folding (fresh running stats mean=0 / var=1) ---
    def bn_fold(w, b):
        return w / jnp.sqrt(1.0 + BN_EPS), b

    s_gcn, sh_gcn = bn_fold(p["gcn_bn_w"], p["gcn_bn_b"])
    Wg = p["Wg"].astype(f32) * s_gcn[None, :, None]                   # (S, C_out, C_in)
    b_pre = s_gcn * jnp.sum(p["bg"], axis=0) + sh_gcn

    if C_in != C_out:
        s_d, sh_d = bn_fold(p["down_bn_w"], p["down_bn_b"])
        Wd = p["Wd"].astype(f32) * s_d[:, None]
        b_pre = b_pre + s_d * p["bd"] + sh_d
    else:
        Wd = jnp.eye(C_out, dtype=f32)[:, :C_in]

    s_t, sh_t = bn_fold(p["tcn_bn_w"], p["tcn_bn_b"])
    Wt = jnp.transpose(p["Wt"], (2, 0, 1)).astype(f32) * s_t[None, :, None]  # (K,C_out,C_out)
    b_post = s_t * p["bt"] + sh_t

    if not residual:
        Wr = jnp.zeros((C_out, C_in), f32)
    elif C_in == C_out and stride == 1:
        Wr = jnp.eye(C_out, dtype=f32)
    else:
        s_r, sh_r = bn_fold(p["res_bn_w"], p["res_bn_b"])
        Wr = p["Wr"].astype(f32) * s_r[:, None]
        b_post = b_post + s_r * p["br"] + sh_r

    # --- padded sizes & tiling ---
    Nb = max(1, 128 // V)                    # batch elements stacked into lanes
    L = Nb * V
    Lp = _round_up(L, 128)                   # lane-dense last dim
    G = -(-N // Nb)
    N_pad = G * Nb

    Ci_pad = _round_up(C_in, 16)             # bf16 sublane-packing alignment
    Co_pad = _round_up(C_out, 8)             # f32 scratch alignment

    Tt = max(1, min(64, -(-T // 2)))         # T tile (>=2 grid steps along T when T >= 2)
    while (Tt * C_out) % 8:                  # keep the output block sublane-aligned
        Tt += 1
    NT = -(-T // Tt)
    T_pad = NT * Tt
    Tw = Tt + 2 * pad                        # haloed window per T tile
    T_lay = T_pad + 2 * pad                  # layout time extent (zero halo both ends)

    # --- concatenated, BN-folded weights ---
    W1 = jnp.zeros((C_out, (S + 1) * Ci_pad), f32)
    W1 = W1.at[:, :C_in].set(Wd)
    for s in range(S):
        W1 = W1.at[:, (s + 1) * Ci_pad:(s + 1) * Ci_pad + C_in].set(Wg[s])
    W1 = W1.astype(bf16)

    W2 = jnp.zeros((C_out, K * Co_pad + Ci_pad), f32)
    for k in range(K):
        W2 = W2.at[:, k * Co_pad:k * Co_pad + C_out].set(Wt[k])
    W2 = W2.at[:, K * Co_pad:K * Co_pad + C_in].set(Wr)
    W2 = W2.astype(bf16)

    biases = jnp.stack([b_pre, b_post], axis=1).astype(f32)           # (C_out, 2)

    # --- adjacency: L2 norm hoisted out of the kernel; block-diag over the batch tile ---
    A = p["A"].astype(f32)
    An = A / (jnp.sqrt(jnp.sum(A * A, axis=1, keepdims=True)) + 1e-4)  # (S, V, V)
    eye_nb = jnp.eye(Nb, dtype=f32)
    Abig = jnp.stack([jnp.kron(eye_nb, An[s]) for s in range(S)], axis=0)
    Abig = jnp.pad(Abig, ((0, 0), (0, Lp - L), (0, Lp - L))).astype(bf16)  # (S, Lp, Lp)

    # --- input layout: rows = (t, c) t-major, lanes = (batch-in-tile, v), zero halo ---
    xp = jnp.pad(x.astype(f32),
                 ((0, N_pad - N), (0, Ci_pad - C_in), (pad, T_lay - T - pad), (0, 0)))
    xg = xp.reshape(G, Nb, Ci_pad, T_lay, V).transpose(0, 3, 2, 1, 4)
    xg = xg.reshape(G, T_lay * Ci_pad, Nb * V)
    xg = jnp.pad(xg, ((0, 0), (0, 0), (0, Lp - L))).astype(bf16)

    kernel = _make_kernel(S=S, K=K, T=T, Tt=Tt, Tw=Tw, pad=pad,
                          C_out=C_out, Ci_pad=Ci_pad, Co_pad=Co_pad, Lp=Lp)

    flops = 2 * G * NT * (S * Tw * Ci_pad * Lp * Lp
                          + Tw * C_out * (S + 1) * Ci_pad * Lp
                          + Tt * C_out * (K * Co_pad + Ci_pad) * Lp)
    bytes_accessed = (xg.size * 2 + Abig.size * 2 + W1.size * 2 + W2.size * 2
                      + biases.size * 4 + G * T_pad * C_out * Lp * 2)
    cost = pl.CostEstimate(flops=int(flops), transcendentals=0,
                           bytes_accessed=int(bytes_accessed))

    vmem_est = (2 * T_lay * Ci_pad * Lp * 2          # x block (double-buffered)
                + 2 * S * Lp * Lp * 2                # adjacency
                + 2 * (W1.size + W2.size) * 2 + 4 * biases.size
                + 2 * Tt * C_out * Lp * 2            # out block
                + S * Tw * Ci_pad * Lp * 2           # mix scratch
                + Tw * Co_pad * Lp * 4)              # g scratch
    vmem_limit = int(min(100 * 2 ** 20, max(32 * 2 ** 20, 2 * vmem_est)))

    out = pl.pallas_call(
        kernel,
        out_shape=jax.ShapeDtypeStruct((G, T_pad * C_out, Lp), bf16),
        grid=(G, NT),
        in_specs=[
            pl.BlockSpec((1, T_lay * Ci_pad, Lp), lambda g, t: (g, 0, 0)),   # x
            pl.BlockSpec((S, Lp, Lp), lambda g, t: (0, 0, 0)),               # adjacency
            pl.BlockSpec((C_out, (S + 1) * Ci_pad), lambda g, t: (0, 0)),    # phase-1 W
            pl.BlockSpec((C_out, K * Co_pad + Ci_pad), lambda g, t: (0, 0)), # phase-2 W
            pl.BlockSpec((C_out, 2), lambda g, t: (0, 0)),                   # merged biases
        ],
        out_specs=pl.BlockSpec((1, Tt * C_out, Lp), lambda g, t: (g, t, 0)),
        scratch_shapes=[
            pltpu.VMEM((S, Tw * Ci_pad, Lp), bf16),        # graph-mix scratch
            pltpu.VMEM((Tw * Co_pad, Lp), jnp.float32),    # gcn-output (zero-haloed)
        ],
        compiler_params=pltpu.CompilerParams(
            dimension_semantics=("parallel", "parallel"),
            vmem_limit_bytes=vmem_limit),
        cost_estimate=cost,
    )(xg, Abig, W1, W2, biases)

    out = out[:, :, :L].reshape(G, T_pad, C_out, Nb, V).transpose(0, 3, 2, 1, 4)
    out = out.reshape(N_pad, C_out, T_pad, V)
    return out[:N, :, :T, :]


# ----------------------------------------------------------------------------
# Pure-JAX reference mirroring the PyTorch forward (eval-mode BN), for checking.
# ----------------------------------------------------------------------------
def reference_forward(x, p):
    N, C_in, T, V = x.shape
    S, C_out, _ = p["Wg"].shape

    def bn(v, w, b):
        return v * (w / jnp.sqrt(1.0 + BN_EPS))[None, :, None, None] + b[None, :, None, None]

    A = p["A"]
    An = A / (jnp.sqrt(jnp.sum(A * A, axis=1, keepdims=True)) + 1e-4)
    x2 = x.reshape(N, C_in * T, V)
    y = jnp.zeros((N, C_out, T, V), jnp.float32)
    for i in range(S):
        m = jnp.matmul(x2, An[i]).reshape(N, C_in, T, V)
        y = y + jnp.einsum("oc,nctv->notv", p["Wg"][i], m) + p["bg"][i][None, :, None, None]
    y = bn(y, p["gcn_bn_w"], p["gcn_bn_b"])
    d = jnp.einsum("oc,nctv->notv", p["Wd"], x) + p["bd"][None, :, None, None]
    d = bn(d, p["down_bn_w"], p["down_bn_b"])
    g = jax.nn.relu(y + d)
    gp = jnp.pad(g, ((0, 0), (0, 0), (2, 2), (0, 0)))
    t = p["bt"][None, :, None, None] + sum(
        jnp.einsum("oc,nctv->notv", p["Wt"][:, :, k], gp[:, :, k:k + T, :]) for k in range(5))
    t = bn(t, p["tcn_bn_w"], p["tcn_bn_b"])
    r = jnp.einsum("oc,nctv->notv", p["Wr"], x) + p["br"][None, :, None, None]
    r = bn(r, p["res_bn_w"], p["res_bn_b"])
    return jax.nn.relu(t + r)


if __name__ == "__main__":
    # Small shapes consistent with the module: N, C_in, C_out, T, V, num_subset.
    N, C_in, C_out, T, V, S = 2, 4, 8, 16, 16, 3

    key = jax.random.PRNGKey(0)
    k = jax.random.split(key, 8)

    x = jax.random.normal(k[0], (N, C_in, T, V), jnp.float32)
    A = jax.random.uniform(k[1], (S, V, V), jnp.float32)       # adjacency stack -> PA param

    params = dict(
        A=A,
        # conv_branch_init: std = sqrt(2 / (out * in * 1 * num_subset)), bias = 0
        Wg=jax.random.normal(k[2], (S, C_out, C_in), jnp.float32)
        * np.sqrt(2.0 / (C_out * C_in * 1 * S)),
        bg=jnp.zeros((S, C_out), jnp.float32),
        # conv_init (kaiming fan_out): down conv 1x1 -> fan_out = C_out
        Wd=jax.random.normal(k[3], (C_out, C_in), jnp.float32) * np.sqrt(2.0 / C_out),
        bd=jnp.zeros((C_out,), jnp.float32),
        # unit_tcn conv (5,1): fan_out = C_out * 5
        Wt=jax.random.normal(k[4], (C_out, C_out, 5), jnp.float32) * np.sqrt(2.0 / (C_out * 5)),
        bt=jnp.zeros((C_out,), jnp.float32),
        # residual unit_tcn conv (1,1): fan_out = C_out
        Wr=jax.random.normal(k[5], (C_out, C_in), jnp.float32) * np.sqrt(2.0 / C_out),
        br=jnp.zeros((C_out,), jnp.float32),
        # bn_init(self.bn, 1e-6) for the gcn BN, scale=1 for all others, bias=0.
        gcn_bn_w=jnp.full((C_out,), 1e-6, jnp.float32),
        gcn_bn_b=jnp.zeros((C_out,), jnp.float32),
        down_bn_w=jnp.ones((C_out,), jnp.float32),
        down_bn_b=jnp.zeros((C_out,), jnp.float32),
        tcn_bn_w=jnp.ones((C_out,), jnp.float32),
        tcn_bn_b=jnp.zeros((C_out,), jnp.float32),
        res_bn_w=jnp.ones((C_out,), jnp.float32),
        res_bn_b=jnp.zeros((C_out,), jnp.float32),
    )

    fwd = jax.jit(lambda xx: tcn_gcn_unit_forward(xx, params, stride=1, residual=True))
    out = jax.block_until_ready(fwd(x))

    ref = reference_forward(x, params)
    # bf16 operands + bf16 output (f32 accumulation) vs f32 reference -> loosened tolerance.
    np.testing.assert_allclose(np.asarray(out.astype(jnp.float32)), np.asarray(ref),
                               rtol=5e-2, atol=5e-2)

    print("KERNEL_OK")
</pallas_src>

<mosaic_0001>
module attributes {stable_mosaic.version = 11 : i64} {
  func.func @kernel(%arg0: i32, %arg1: i32, %arg2: memref<1x320x128xbf16, #tpu.memory_space<vmem>>, %arg3: memref<3x128x128xbf16, #tpu.memory_space<vmem>>, %arg4: memref<8x64xbf16, #tpu.memory_space<vmem>>, %arg5: memref<8x56xbf16, #tpu.memory_space<vmem>>, %arg6: memref<8x2xf32, #tpu.memory_space<vmem>>, %arg7: memref<1x64x128xbf16, #tpu.memory_space<vmem>>, %arg8: memref<3x192x128xbf16, #tpu.memory_space<vmem>>, %arg9: memref<96x128xf32, #tpu.memory_space<vmem>>) attributes {dimension_semantics = [#tpu.dimension_semantics<parallel>, #tpu.dimension_semantics<parallel>], iteration_bounds = array<i64: 1, 2>, scalar_prefetch = 0 : i64, scratch_operands = 2 : i64, tpu.core_type = #tpu.core_type<tc>, window_params = [{transform_indices = @transform_0, window_bounds = array<i64: 1, 320, 128>}, {pipeline_mode = #tpu.pipeline_mode<synchronous>, transform_indices = @transform_1, window_bounds = array<i64: 3, 128, 128>}, {pipeline_mode = #tpu.pipeline_mode<synchronous>, transform_indices = @transform_2, window_bounds = array<i64: 8, 64>}, {pipeline_mode = #tpu.pipeline_mode<synchronous>, transform_indices = @transform_3, window_bounds = array<i64: 8, 56>}, {pipeline_mode = #tpu.pipeline_mode<synchronous>, transform_indices = @transform_4, window_bounds = array<i64: 8, 2>}, {transform_indices = @transform_5, window_bounds = array<i64: 1, 64, 128>}]} {
    %c8_i32 = arith.constant 8 : i32
    %0 = arith.muli %arg1, %c8_i32 : i32
    %c0 = arith.constant 0 : index
    %c0_0 = arith.constant 0 : index
    %1 = vector.load %arg4[%c0, %c0_0] : memref<8x64xbf16, #tpu.memory_space<vmem>>, vector<8x64xbf16>
    %c0_1 = arith.constant 0 : index
    %c0_2 = arith.constant 0 : index
    %2 = vector.load %arg5[%c0_1, %c0_2] : memref<8x56xbf16, #tpu.memory_space<vmem>>, vector<8x56xbf16>
    %c0_3 = arith.constant 0 : index
    %c0_4 = arith.constant 0 : index
    %3 = vector.load %arg6[%c0_3, %c0_4] : memref<8x2xf32, #tpu.memory_space<vmem>>, vector<8x1xf32>
    %4 = vector.shape_cast %3 : vector<8x1xf32> to vector<8x1xf32>
    %5 = vector.broadcast %4 : vector<8x1xf32> to vector<8x128xf32>
    %c0_5 = arith.constant 0 : index
    %c1 = arith.constant 1 : index
    %6 = vector.load %arg6[%c0_5, %c1] : memref<8x2xf32, #tpu.memory_space<vmem>>, vector<8x1xf32>
    %7 = vector.shape_cast %6 : vector<8x1xf32> to vector<8x1xf32>
    %8 = vector.broadcast %7 : vector<8x1xf32> to vector<8x128xf32>
    %c16_i32 = arith.constant 16 : i32
    %9 = arith.muli %0, %c16_i32 : i32
    %10 = tpu.assume_multiple %9, 16 : i32
    %c0_6 = arith.constant 0 : index
    %11 = arith.index_cast %10 : i32 to index
    %c0_7 = arith.constant 0 : index
    %12 = vector.load %arg2[%c0_6, %11, %c0_7] : memref<1x320x128xbf16, #tpu.memory_space<vmem>>, vector<1x192x128xbf16>
    %13 = vector.shape_cast %12 : vector<1x192x128xbf16> to vector<192x128xbf16>
    %c0_8 = arith.constant 0 : index
    %c0_9 = arith.constant 0 : index
    %c0_10 = arith.constant 0 : index
    %14 = vector.load %arg3[%c0_8, %c0_9, %c0_10] : memref<3x128x128xbf16, #tpu.memory_space<vmem>>, vector<1x128x128xbf16>
    %15 = vector.shape_cast %14 : vector<1x128x128xbf16> to vector<128x128xbf16>
    %cst = arith.constant dense<0.000000e+00> : vector<192x128xf32>
    %16 = tpu.matmul %13, %15, %cst {dimension_numbers = #tpu.dot_dimension_numbers<[1], [0], [0], [1], [0, 0, 1, 1], [], []>} : vector<192x128xbf16>, vector<128x128xbf16>, vector<192x128xf32> -> vector<192x128xf32>
    %17 = arith.truncf %16 : vector<192x128xf32> to vector<192x128xbf16>
    %c0_11 = arith.constant 0 : index
    %c0_12 = arith.constant 0 : index
    %c0_13 = arith.constant 0 : index
    %18 = vector.load %arg8[%c0_11, %c0_12, %c0_13] : memref<3x192x128xbf16, #tpu.memory_space<vmem>>, vector<1x192x128xbf16>
    %19 = vector.shape_cast %18 : vector<1x192x128xbf16> to vector<192x128xbf16>
    %20 = vector.shape_cast %17 : vector<192x128xbf16> to vector<1x192x128xbf16>
    tpu.vector_store %arg8[%c0_11, %c0_12, %c0_13], %20 {strides = array<i32>} : memref<3x192x128xbf16, #tpu.memory_space<vmem>>, vector<1x192x128xbf16>,
    %c1_14 = arith.constant 1 : index
    %c0_15 = arith.constant 0 : index
    %c0_16 = arith.constant 0 : index
    %21 = vector.load %arg3[%c1_14, %c0_15, %c0_16] : memref<3x128x128xbf16, #tpu.memory_space<vmem>>, vector<1x128x128xbf16>
    %22 = vector.shape_cast %21 : vector<1x128x128xbf16> to vector<128x128xbf16>
    %cst_17 = arith.constant dense<0.000000e+00> : vector<192x128xf32>
    %23 = tpu.matmul %13, %22, %cst_17 {dimension_numbers = #tpu.dot_dimension_numbers<[1], [0], [0], [1], [0, 0, 1, 1], [], []>} : vector<192x128xbf16>, vector<128x128xbf16>, vector<192x128xf32> -> vector<192x128xf32>
    %24 = arith.truncf %23 : vector<192x128xf32> to vector<192x128xbf16>
    %c1_18 = arith.constant 1 : index
    %c0_19 = arith.constant 0 : index
    %c0_20 = arith.constant 0 : index
    %25 = vector.load %arg8[%c1_18, %c0_19, %c0_20] : memref<3x192x128xbf16, #tpu.memory_space<vmem>>, vector<1x192x128xbf16>
    %26 = vector.shape_cast %25 : vector<1x192x128xbf16> to vector<192x128xbf16>
    %27 = vector.shape_cast %24 : vector<192x128xbf16> to vector<1x192x128xbf16>
    tpu.vector_store %arg8[%c1_18, %c0_19, %c0_20], %27 {strides = array<i32>} : memref<3x192x128xbf16, #tpu.memory_space<vmem>>, vector<1x192x128xbf16>,
    %c2 = arith.constant 2 : index
    %c0_21 = arith.constant 0 : index
    %c0_22 = arith.constant 0 : index
    %28 = vector.load %arg3[%c2, %c0_21, %c0_22] : memref<3x128x128xbf16, #tpu.memory_space<vmem>>, vector<1x128x128xbf16>
    %29 = vector.shape_cast %28 : vector<1x128x128xbf16> to vector<128x128xbf16>
    %cst_23 = arith.constant dense<0.000000e+00> : vector<192x128xf32>
    %30 = tpu.matmul %13, %29, %cst_23 {dimension_numbers = #tpu.dot_dimension_numbers<[1], [0], [0], [1], [0, 0, 1, 1], [], []>} : vector<192x128xbf16>, vector<128x128xbf16>, vector<192x128xf32> -> vector<192x128xf32>
    %31 = arith.truncf %30 : vector<192x128xf32> to vector<192x128xbf16>
    %c2_24 = arith.constant 2 : index
    %c0_25 = arith.constant 0 : index
    %c0_26 = arith.constant 0 : index
    %32 = vector.load %arg8[%c2_24, %c0_25, %c0_26] : memref<3x192x128xbf16, #tpu.memory_space<vmem>>, vector<1x192x128xbf16>
    %33 = vector.shape_cast %32 : vector<1x192x128xbf16> to vector<192x128xbf16>
    %34 = vector.shape_cast %31 : vector<192x128xbf16> to vector<1x192x128xbf16>
    tpu.vector_store %arg8[%c2_24, %c0_25, %c0_26], %34 {strides = array<i32>} : memref<3x192x128xbf16, #tpu.memory_space<vmem>>, vector<1x192x128xbf16>,
    %c0_i32 = arith.constant 0 : i32
    %c12_i32 = arith.constant 12 : i32
    %35 = arith.addi %c0_i32, %c12_i32 : i32
    %c1_i32 = arith.constant 1 : i32
    scf.for %arg10 = %c0_i32 to %35 step %c1_i32  : i32 {
      %37 = arith.addi %0, %arg10 : i32
      %c16_i32_32 = arith.constant 16 : i32
      %38 = arith.muli %37, %c16_i32_32 : i32
      %39 = tpu.assume_multiple %38, 16 : i32
      %c16_i32_33 = arith.constant 16 : i32
      %40 = arith.muli %arg10, %c16_i32_33 : i32
      %41 = tpu.assume_multiple %40, 16 : i32
      %c0_34 = arith.constant 0 : index
      %42 = arith.index_cast %39 : i32 to index
      %c0_35 = arith.constant 0 : index
      %43 = vector.load %arg2[%c0_34, %42, %c0_35] : memref<1x320x128xbf16, #tpu.memory_space<vmem>>, vector<1x16x128xbf16>
      %44 = vector.shape_cast %43 : vector<1x16x128xbf16> to vector<16x128xbf16>
      %c0_36 = arith.constant 0 : index
      %45 = arith.index_cast %41 : i32 to index
      %c0_37 = arith.constant 0 : index
      %46 = vector.load %arg8[%c0_36, %45, %c0_37] : memref<3x192x128xbf16, #tpu.memory_space<vmem>>, vector<1x16x128xbf16>
      %47 = vector.shape_cast %46 : vector<1x16x128xbf16> to vector<16x128xbf16>
      %c1_38 = arith.constant 1 : index
      %48 = arith.index_cast %41 : i32 to index
      %c0_39 = arith.constant 0 : index
      %49 = vector.load %arg8[%c1_38, %48, %c0_39] : memref<3x192x128xbf16, #tpu.memory_space<vmem>>, vector<1x16x128xbf16>
      %50 = vector.shape_cast %49 : vector<1x16x128xbf16> to vector<16x128xbf16>
      %c2_40 = arith.constant 2 : index
      %51 = arith.index_cast %41 : i32 to index
      %c0_41 = arith.constant 0 : index
      %52 = vector.load %arg8[%c2_40, %51, %c0_41] : memref<3x192x128xbf16, #tpu.memory_space<vmem>>, vector<1x16x128xbf16>
      %53 = vector.shape_cast %52 : vector<1x16x128xbf16> to vector<16x128xbf16>
      %54 = tpu.concatenate %44, %47, %50, %53 in 0 : vector<16x128xbf16>, vector<16x128xbf16>, vector<16x128xbf16>, vector<16x128xbf16> -> vector<64x128xbf16>
      %cst_42 = arith.constant dense<0.000000e+00> : vector<8x128xf32>
      %55 = tpu.matmul %1, %54, %cst_42 {dimension_numbers = #tpu.dot_dimension_numbers<[1], [0], [0], [1], [0, 0, 1, 1], [], []>} : vector<8x64xbf16>, vector<64x128xbf16>, vector<8x128xf32> -> vector<8x128xf32>
      %56 = arith.addf %55, %5 : vector<8x128xf32>
      %cst_43 = arith.constant 0.000000e+00 : f32
      %57 = vector.broadcast %cst_43 : f32 to vector<8x128xf32>
      %58 = arith.maximumf %56, %57 : vector<8x128xf32>
      %59 = arith.addi %0, %arg10 : i32
      %c2_i32 = arith.constant 2 : i32
      %60 = arith.cmpi sge, %59, %c2_i32 : i32
      %c18_i32 = arith.constant 18 : i32
      %61 = arith.cmpi slt, %59, %c18_i32 : i32
      %62 = arith.andi %60, %61 : i1
      %cst_44 = arith.constant 0.000000e+00 : f32
      %63 = vector.broadcast %cst_44 : f32 to vector<8x128xf32>
      %64 = arith.select %62, %58, %63 : vector<8x128xf32>
      %c8_i32_45 = arith.constant 8 : i32
      %65 = arith.muli %arg10, %c8_i32_45 : i32
      %66 = tpu.assume_multiple %65, 8 : i32
      %67 = arith.index_cast %66 : i32 to index
      %c0_46 = arith.constant 0 : index
      %68 = vector.load %arg9[%67, %c0_46] : memref<96x128xf32, #tpu.memory_space<vmem>>, vector<8x128xf32>
      tpu.vector_store %arg9[%67, %c0_46], %64 {strides = array<i32>} : memref<96x128xf32, #tpu.memory_space<vmem>>, vector<8x128xf32>,
    }
    %c12_i32_27 = arith.constant 12 : i32
    %c0_i32_28 = arith.constant 0 : i32
    %c8_i32_29 = arith.constant 8 : i32
    %36 = arith.addi %c0_i32_28, %c8_i32_29 : i32
    %c1_i32_30 = arith.constant 1 : i32
    scf.for %arg10 = %c0_i32_28 to %36 step %c1_i32_30  : i32 {
      %c8_i32_32 = arith.constant 8 : i32
      %37 = arith.muli %arg10, %c8_i32_32 : i32
      %38 = tpu.assume_multiple %37, 8 : i32
      %39 = arith.index_cast %38 : i32 to index
      %c0_33 = arith.constant 0 : index
      %40 = vector.load %arg9[%39, %c0_33] : memref<96x128xf32, #tpu.memory_space<vmem>>, vector<40x128xf32>
      %41 = arith.truncf %40 : vector<40x128xf32> to vector<40x128xbf16>
      %c2_i32 = arith.constant 2 : i32
      %42 = arith.addi %0, %c2_i32 : i32
      %43 = arith.addi %42, %arg10 : i32
      %c16_i32_34 = arith.constant 16 : i32
      %44 = arith.muli %43, %c16_i32_34 : i32
      %45 = tpu.assume_multiple %44, 16 : i32
      %c0_35 = arith.constant 0 : index
      %46 = arith.index_cast %45 : i32 to index
      %c0_36 = arith.constant 0 : index
      %47 = vector.load %arg2[%c0_35, %46, %c0_36] : memref<1x320x128xbf16, #tpu.memory_space<vmem>>, vector<1x16x128xbf16>
      %48 = vector.shape_cast %47 : vector<1x16x128xbf16> to vector<16x128xbf16>
      %49 = tpu.concatenate %41, %48 in 0 : vector<40x128xbf16>, vector<16x128xbf16> -> vector<56x128xbf16>
      %cst_37 = arith.constant dense<0.000000e+00> : vector<8x128xf32>
      %50 = tpu.matmul %2, %49, %cst_37 {dimension_numbers = #tpu.dot_dimension_numbers<[1], [0], [0], [1], [0, 0, 1, 1], [], []>} : vector<8x56xbf16>, vector<56x128xbf16>, vector<8x128xf32> -> vector<8x128xf32>
      %51 = arith.addf %50, %8 : vector<8x128xf32>
      %cst_38 = arith.constant 0.000000e+00 : f32
      %52 = vector.broadcast %cst_38 : f32 to vector<8x128xf32>
      %53 = arith.maximumf %51, %52 : vector<8x128xf32>
      %54 = arith.truncf %53 : vector<8x128xf32> to vector<8x128xbf16>
      %c8_i32_39 = arith.constant 8 : i32
      %55 = arith.muli %arg10, %c8_i32_39 : i32
      %c0_40 = arith.constant 0 : index
      %56 = arith.index_cast %55 : i32 to index
      %c0_41 = arith.constant 0 : index
      %57 = vector.load %arg7[%c0_40, %56, %c0_41] : memref<1x64x128xbf16, #tpu.memory_space<vmem>>, vector<1x8x128xbf16>
      %58 = vector.shape_cast %57 : vector<1x8x128xbf16> to vector<8x128xbf16>
      %59 = vector.shape_cast %54 : vector<8x128xbf16> to vector<1x8x128xbf16>
      tpu.vector_store %arg7[%c0_40, %56, %c0_41], %59 {strides = array<i32>} : memref<1x64x128xbf16, #tpu.memory_space<vmem>>, vector<1x8x128xbf16>,
    }
    %c8_i32_31 = arith.constant 8 : i32
    return
  }
  func.func @transform_0(%arg0: i32, %arg1: i32) -> (i32, i32, i32) {
    %c0_i32 = arith.constant 0 : i32
    %c0_i32_0 = arith.constant 0 : i32
    %c0_i32_1 = arith.constant 0 : i32
    return %arg0, %c0_i32, %c0_i32_0 : i32, i32, i32
  }
  func.func @transform_1(%arg0: i32, %arg1: i32) -> (i32, i32, i32) {
    %c0_i32 = arith.constant 0 : i32
    %c0_i32_0 = arith.constant 0 : i32
    %c0_i32_1 = arith.constant 0 : i32
    %c0_i32_2 = arith.constant 0 : i32
    return %c0_i32, %c0_i32_0, %c0_i32_1 : i32, i32, i32
  }
  func.func @transform_2(%arg0: i32, %arg1: i32) -> (i32, i32) {
    %c0_i32 = arith.constant 0 : i32
    %c0_i32_0 = arith.constant 0 : i32
    %c0_i32_1 = arith.constant 0 : i32
    return %c0_i32, %c0_i32_0 : i32, i32
  }
  func.func @transform_3(%arg0: i32, %arg1: i32) -> (i32, i32) {
    %c0_i32 = arith.constant 0 : i32
    %c0_i32_0 = arith.constant 0 : i32
    %c0_i32_1 = arith.constant 0 : i32
    return %c0_i32, %c0_i32_0 : i32, i32
  }
  func.func @transform_4(%arg0: i32, %arg1: i32) -> (i32, i32) {
    %c0_i32 = arith.constant 0 : i32
    %c0_i32_0 = arith.constant 0 : i32
    %c0_i32_1 = arith.constant 0 : i32
    return %c0_i32, %c0_i32_0 : i32, i32
  }
  func.func @transform_5(%arg0: i32, %arg1: i32) -> (i32, i32, i32) {
    %c0_i32 = arith.constant 0 : i32
    %c0_i32_0 = arith.constant 0 : i32
    return %arg0, %arg1, %c0_i32 : i32, i32, i32
  }
}

</mosaic_0001>

<llo_original>
// kernel: _lambda_.1
$region0: #{_lambda_.1}
  #allocation0 [shape = 'u32[]', space=smem, size = 0x4, offset = 0x4, fixed_abs, tag = 'smem constant byte address 0x4 - core index']
  #allocation1 [shape = 'u32[144,128]{1,0:T(1,128)}', space=vmem, size = 0x12000, scoped, tag = 'internal scratch']
  #allocation2 [shape = 'bf16[3,192,128]{2,1,0:T(16,128)(2,1)}', space=vmem, size = 0x24000, scoped, tag = 'scratch operand']
  #allocation3 [shape = 'f32[96,128]{1,0:T(8,128)}', space=vmem, size = 0xc000, scoped, tag = 'scratch operand']
  %s0 = inlined_call_operand.vmem [shape: bf16[1,320,128], index: 0, kind: input, shape index: {}]
  %s1 = inlined_call_operand.vmem [shape: bf16[3,128,128], index: 1, kind: input, shape index: {}]
  %s2 = inlined_call_operand.vmem [shape: bf16[8,64], index: 2, kind: input, shape index: {}]
  %s3 = inlined_call_operand.vmem [shape: bf16[8,56], index: 3, kind: input, shape index: {}]
  %s4 = inlined_call_operand.vmem [shape: f32[8,2], index: 4, kind: input, shape index: {}]
  %s5 = inlined_call_operand.vmem [shape: bf16[1,128,128], index: 5, kind: output, shape index: {}]
  %s6 = sld [smem:[#allocation0]]
  $region67: #{_lambda_.1} parent=0
    _
  %s8 = ssub.s32 1, %s6
  %s9 = scalar_select 0, %s8, %s6
  loop: start=0, step=1, limit=4
  $region2: #{_lambda_.1} parent=0 // loop_pre_header
    _
  $region3: #{_lambda_.1} parent=0 // loop_header
    %s11 = sphi 0, %s15
    %p12 = scmp.ge.s32.totalorder %s11, 4
    %s18 = sphi 0, %s30
    %s19 = sphi 0, %s26
    %s20 = sphi 0, %s18
    %s21 = sphi 0, %s19
    %s22 = sphi 0, %s20
    %s23 = sphi 0, %s21
    %s33 = sphi 0, %s35
    %s36 = sphi 0, %s33
    %s37 = sphi 0, %s36
    %s53 = sphi 0, %s37
    %s57 = sphi 0, %s57
    %s59 = sphi 0, %s57
    %s60 = sphi 0, %s59
    %s74 = sphi 0, %s60
    %s78 = sphi 0, %s78
    %s80 = sphi 0, %s78
    %s81 = sphi 0, %s80
    %s95 = sphi 0, %s81
    %s99 = sphi 0, %s99
    %s101 = sphi 0, %s99
    %s102 = sphi 0, %s101
    %s116 = sphi 0, %s102
    %s120 = sphi 0, %s120
    %s122 = sphi 0, %s120
    %s123 = sphi 0, %s122
    %s137 = sphi 0, %s123
    %s145 = sphi 0, %s147
    %s148 = sphi 0, %s145
    %s149 = sphi 0, %s148
    %s165 = sphi 0, %s149
  $region4: #{_lambda_.1} parent=0 // loop_header_branch
    %14 = sbr.rel (%p12) target = $region8
  $region5: #{_lambda_.1} parent=0 // loop_body
    %s16 = ssub.s32 %s11, 1
    %s17 = ssub.s32 %s11, 2
    %s24 = sadd.s32 1, %s19
    %p25 = scmp.ge.s32.totalorder %s24, 2
    %s26 = scalar_select %p25, 0, %s24
    %s27 = sadd.s32 1, %s18
    %s28 = scalar_select %p25, %s27, %s18
    %p29 = scmp.ge.s32.totalorder %s28, 1
    %s30 = scalar_select %p29, 0, %s28
    %s31 = ssub.s32 %s18, %s30
    %p32 = scmp.eq.s32.totalorder %s31, 0
    %s34 = sadd.s32 %s33, 1
    %s35 = scalar_select %p32, %s33, %s34
    %p38 = pneg %p32
    %p39 = scmp.eq.s32.totalorder %s11, 1
    %p40 = por %p38, %p39
    %p41 = scmp.ne.s32.totalorder %s33, %s36
    %p42 = scmp.eq.s32.totalorder %s11, 0
    %p43 = por %p41, %p42
    %p44 = scmp.ne.s32.totalorder %s33, %s36
    %p45 = scmp.eq.s32.totalorder %s16, 1
    %p46 = por %p44, %p45
    %p47 = scmp.ne.s32.totalorder %s36, %s37
    %p48 = scmp.eq.s32.totalorder %s16, 0
    %p49 = por %p47, %p48
    %p50 = scmp.ne.s32.totalorder %s36, %s37
    %p51 = scmp.eq.s32.totalorder %s17, 1
    %p52 = por %p50, %p51
    %p54 = scmp.ne.s32.totalorder %s37, %s53
    %p55 = scmp.eq.s32.totalorder %s17, 0
    %p56 = por %p54, %p55
    %s58 = sadd.s32 %s57, 1
    %p61 = scmp.eq.s32.totalorder %s11, 1
    %p62 = scmp.ne.s32.totalorder %s57, %s59
    %p63 = scmp.eq.s32.totalorder %s11, 0
    %p64 = por %p62, %p63
    %p65 = scmp.ne.s32.totalorder %s57, %s59
    %p66 = scmp.eq.s32.totalorder %s16, 1
    %p67 = por %p65, %p66
    %p68 = scmp.ne.s32.totalorder %s59, %s60
    %p69 = scmp.eq.s32.totalorder %s16, 0
    %p70 = por %p68, %p69
    %p71 = scmp.ne.s32.totalorder %s59, %s60
    %p72 = scmp.eq.s32.totalorder %s17, 1
    %p73 = por %p71, %p72
    %p75 = scmp.ne.s32.totalorder %s60, %s74
    %p76 = scmp.eq.s32.totalorder %s17, 0
    %p77 = por %p75, %p76
    %s79 = sadd.s32 %s78, 1
    %p82 = scmp.eq.s32.totalorder %s11, 1
    %p83 = scmp.ne.s32.totalorder %s78, %s80
    %p84 = scmp.eq.s32.totalorder %s11, 0
    %p85 = por %p83, %p84
    %p86 = scmp.ne.s32.totalorder %s78, %s80
    %p87 = scmp.eq.s32.totalorder %s16, 1
    %p88 = por %p86, %p87
    %p89 = scmp.ne.s32.totalorder %s80, %s81
    %p90 = scmp.eq.s32.totalorder %s16, 0
    %p91 = por %p89, %p90
    %p92 = scmp.ne.s32.totalorder %s80, %s81
    %p93 = scmp.eq.s32.totalorder %s17, 1
    %p94 = por %p92, %p93
    %p96 = scmp.ne.s32.totalorder %s81, %s95
    %p97 = scmp.eq.s32.totalorder %s17, 0
    %p98 = por %p96, %p97
    %s100 = sadd.s32 %s99, 1
    %p103 = scmp.eq.s32.totalorder %s11, 1
    %p104 = scmp.ne.s32.totalorder %s99, %s101
    %p105 = scmp.eq.s32.totalorder %s11, 0
    %p106 = por %p104, %p105
    %p107 = scmp.ne.s32.totalorder %s99, %s101
    %p108 = scmp.eq.s32.totalorder %s16, 1
    %p109 = por %p107, %p108
    %p110 = scmp.ne.s32.totalorder %s101, %s102
    %p111 = scmp.eq.s32.totalorder %s16, 0
    %p112 = por %p110, %p111
    %p113 = scmp.ne.s32.totalorder %s101, %s102
    %p114 = scmp.eq.s32.totalorder %s17, 1
    %p115 = por %p113, %p114
    %p117 = scmp.ne.s32.totalorder %s102, %s116
    %p118 = scmp.eq.s32.totalorder %s17, 0
    %p119 = por %p117, %p118
    %s121 = sadd.s32 %s120, 1
    %p124 = scmp.eq.s32.totalorder %s11, 1
    %p125 = scmp.ne.s32.totalorder %s120, %s122
    %p126 = scmp.eq.s32.totalorder %s11, 0
    %p127 = por %p125, %p126
    %p128 = scmp.ne.s32.totalorder %s120, %s122
    %p129 = scmp.eq.s32.totalorder %s16, 1
    %p130 = por %p128, %p129
    %p131 = scmp.ne.s32.totalorder %s122, %s123
    %p132 = scmp.eq.s32.totalorder %s16, 0
    %p133 = por %p131, %p132
    %p134 = scmp.ne.s32.totalorder %s122, %s123
    %p135 = scmp.eq.s32.totalorder %s17, 1
    %p136 = por %p134, %p135
    %p138 = scmp.ne.s32.totalorder %s123, %s137
    %p139 = scmp.eq.s32.totalorder %s17, 0
    %p140 = por %p138, %p139
    %s141 = ssub.s32 %s18, %s30
    %s142 = ssub.s32 %s19, %s26
    %s143 = sor.u32 %s141, %s142
    %p144 = scmp.eq.s32.totalorder %s143, 0
    %s146 = sadd.s32 %s145, 1
    %s147 = scalar_select %p144, %s145, %s146
    %p150 = pneg %p144
    %p151 = scmp.eq.s32.totalorder %s11, 1
    %p152 = por %p150, %p151
    %p153 = scmp.ne.s32.totalorder %s145, %s148
    %p154 = scmp.eq.s32.totalorder %s11, 0
    %p155 = por %p153, %p154
    %p156 = scmp.ne.s32.totalorder %s145, %s148
    %p157 = scmp.eq.s32.totalorder %s16, 1
    %p158 = por %p156, %p157
    %p159 = scmp.ne.s32.totalorder %s148, %s149
    %p160 = scmp.eq.s32.totalorder %s16, 0
    %p161 = por %p159, %p160
    %p162 = scmp.ne.s32.totalorder %s148, %s149
    %p163 = scmp.eq.s32.totalorder %s17, 1
    %p164 = por %p162, %p163
    %p166 = scmp.ne.s32.totalorder %s149, %s165
    %p167 = scmp.eq.s32.totalorder %s17, 0
    %p168 = por %p166, %p167
    %p169 = scmp.le.s32.totalorder 1, %s11
    %p170 = scmp.lt.s32.totalorder %s11, 3
    %p171 = pnand %p169, %p170
    %p172 = pneg %p171
    // Predicated region
    $region9: #{_lambda_.1} parent=5 // pred_check
      _
    $region10: #{_lambda_.1} parent=5 // pred_check_branch
      %174 = sbr.rel (%p171) target = $region12
    $region11: #{_lambda_.1} parent=5 // pred_region
      %s175 = ssub.s32 %s11, 1
      // Predicated region
      $region13: #{_lambda_.1} parent=11 // pred_check
        %p176 = pneg %p49
      $region14: #{_lambda_.1} parent=11 // pred_check_branch
        %178 = sbr.rel (%p176) target = $region16
      $region15: #{_lambda_.1} parent=11 // pred_region
        %p179 = scmp.lt.s32.totalorder %s20, 0
        %s180 = scalar_select %p179, %s20, 0
        %s181 = smul.addr %s180, 40
        %s182 = smul.addr %s181, 4
        %s183 = scalar_lea.vmem %s0, %s182
      $region16: #{_lambda_.1} parent=11 // pred_fallthru
        _
      // Predicated region
      $region17: #{_lambda_.1} parent=11 // pred_check
        %p184 = pneg %p70
      $region18: #{_lambda_.1} parent=11 // pred_check_branch
        %186 = sbr.rel (%p184) target = $region20
      $region19: #{_lambda_.1} parent=11 // pred_region
        _
      $region20: #{_lambda_.1} parent=11 // pred_fallthru
        _
      // Predicated region
      $region21: #{_lambda_.1} parent=11 // pred_check
        %p187 = pneg %p91
      $region22: #{_lambda_.1} parent=11 // pred_check_branch
        %189 = sbr.rel (%p187) target = $region24
      $region23: #{_lambda_.1} parent=11 // pred_region
        _
      $region24: #{_lambda_.1} parent=11 // pred_fallthru
        _
      // Predicated region
      $region25: #{_lambda_.1} parent=11 // pred_check
        %p190 = pneg %p112
      $region26: #{_lambda_.1} parent=11 // pred_check_branch
        %192 = sbr.rel (%p190) target = $region28
      $region27: #{_lambda_.1} parent=11 // pred_region
        _
      $region28: #{_lambda_.1} parent=11 // pred_fallthru
        _
      // Predicated region
      $region29: #{_lambda_.1} parent=11 // pred_check
        %p193 = pneg %p133
      $region30: #{_lambda_.1} parent=11 // pred_check_branch
        %195 = sbr.rel (%p193) target = $region32
      $region31: #{_lambda_.1} parent=11 // pred_region
        _
      $region32: #{_lambda_.1} parent=11 // pred_fallthru
        _
    $region12: #{_lambda_.1} parent=5 // pred_fallthru
      _
    %p196 = scmp.lt.s32.totalorder %s11, 2
    // Predicated region
    $region33: #{_lambda_.1} parent=5 // pred_check
      %p197 = pneg %p196
    $region34: #{_lambda_.1} parent=5 // pred_check_branch
      %199 = sbr.rel (%p197) target = $region36
    $region35: #{_lambda_.1} parent=5 // pred_region
      _
    $region36: #{_lambda_.1} parent=5 // pred_fallthru
      _
    %p200 = scmp.le.s32.totalorder 1, %s11
    %p201 = scmp.lt.s32.totalorder %s11, 3
    %p202 = pnand %p200, %p201
    %p203 = pneg %p202
    // Predicated region
    $region37: #{_lambda_.1} parent=5 // pred_check
      _
    $region38: #{_lambda_.1} parent=5 // pred_check_branch
      %205 = sbr.rel (%p202) target = $region40
    $region39: #{_lambda_.1} parent=5 // pred_region
      %s206 = ssub.s32 %s11, 1
      %p207 = scmp.lt.s32.totalorder %s20, 0
      %s208 = scalar_select %p207, %s20, 0
      %s209 = smul.addr %s208, 40
      %s210 = smul.addr %s209, 4
      %s211 = scalar_lea.vmem %s0, %s210
      %p212 = pneg %p49
      %p213 = pneg %p46
      %p214 = pneg %p70
      %p215 = pneg %p67
      %p216 = pneg %p91
      %p217 = pneg %p88
      %p218 = pneg %p112
      %p219 = pneg %p109
      %p220 = pneg %p133
      %p221 = pneg %p130
      %p222 = pneg %p161
      %p223 = pneg %p158
      %s224 = smul.u32 8, %s21
      %p225 = scmp.lt.s32.totalorder %s20, 0
      %s226 = scalar_select %p225, %s20, 0
      %p227 = scmp.lt.s32.totalorder %s224, 15
      %s228 = scalar_select %p227, %s224, 15
      %s229 = smul.addr %s226, 16
      %s230 = sadd.s32 %s228, %s229
      %s231 = smul.addr %s230, 4
      %s232 = scalar_lea.vmem %s5, %s231
      %p233 = scmp.lt.s32.totalorder %s20, 0
      %s234 = scalar_select %p233, %s20, 0
      %s235 = smul.addr %s234, 40
      %s236 = smul.addr %s235, 4
      %s237 = scalar_lea.vmem %s0, %s236
      %s238 = smul.u32 8, %s21
      %p239 = scmp.lt.s32.totalorder %s20, 0
      %s240 = scalar_select %p239, %s20, 0
      %p241 = scmp.lt.s32.totalorder %s238, 15
      %s242 = scalar_select %p241, %s238, 15
      %s243 = smul.addr %s240, 16
      %s244 = sadd.s32 %s242, %s243
      %s245 = smul.addr %s244, 4
      %s246 = scalar_lea.vmem %s5, %s245
      %s247 = smul.u32 8, %s21
      %s249 = smul.u32 %s21, 8
      %v250 = vld [vmem:[%s2] sm:$0xf]
      %v251 = vld [vmem:[%s3] sm:$0xf]
      %v252 = vld [vmem:[%s4] sm:$0xff]
      %254 = vset.pattern.permute.xlu0 0
      %255 = vperm.xlu0 %254, %v252
      %v256 = vpop.permute.xlu0 %255
      %258 = vset.pattern.permute.xlu0 1
      %259 = vperm.xlu0 %258, %v252
      %v260 = vpop.permute.xlu0 %259
      %s262 = smul.u32 %s21, 128
      %s263 = sshra.s32 %s262, 3
      %s264 = sand.u32 %s262, 7
      %s265 = smul.addr %s263, 4
      %s266 = scalar_lea.vmem %s237, %s265
      %v267 = vld [vmem:[%s266] sm:$0xf]
      %v268 = vld [vmem:[%s266 + $0x4] sm:$0xf]
      %v269 = vld [vmem:[%s266 + $0x8] sm:$0xf]
      %v270 = vld [vmem:[%s266 + $0xc] sm:$0xf]
      %v271 = vld [vmem:[%s266 + $0x10] sm:$0xf]
      %v272 = vld [vmem:[%s266 + $0x14] sm:$0xf]
      %v273 = vld [vmem:[%s266 + $0x18] sm:$0xf]
      %v274 = vld [vmem:[%s266 + $0x1c] sm:$0xf]
      %v275 = vld [vmem:[%s266 + $0x20] sm:$0xf]
      %v276 = vld [vmem:[%s266 + $0x24] sm:$0xf]
      %v277 = vld [vmem:[%s266 + $0x28] sm:$0xf]
      %v278 = vld [vmem:[%s266 + $0x2c] sm:$0xf]
      %v279 = vld [vmem:[%s266 + $0x30] sm:$0xf]
      %v280 = vld [vmem:[%s266 + $0x34] sm:$0xf]
      %v281 = vld [vmem:[%s266 + $0x38] sm:$0xf]
      %v282 = vld [vmem:[%s266 + $0x3c] sm:$0xf]
      %v283 = vld [vmem:[%s266 + $0x40] sm:$0xf]
      %v284 = vld [vmem:[%s266 + $0x44] sm:$0xf]
      %v285 = vld [vmem:[%s266 + $0x48] sm:$0xf]
      %v286 = vld [vmem:[%s266 + $0x4c] sm:$0xf]
      %v287 = vld [vmem:[%s266 + $0x50] sm:$0xf]
      %v288 = vld [vmem:[%s266 + $0x54] sm:$0xf]
      %v289 = vld [vmem:[%s266 + $0x58] sm:$0xf]
      %v290 = vld [vmem:[%s266 + $0x5c] sm:$0xf]
      %v291 = vld [vmem:[%s1] sm:$0xf]
      %v292 = vld [vmem:[%s1 + $0x4] sm:$0xf]
      %v293 = vld [vmem:[%s1 + $0x8] sm:$0xf]
      %v294 = vld [vmem:[%s1 + $0xc] sm:$0xf]
      %v295 = vld [vmem:[%s1 + $0x10] sm:$0xf]
      %v296 = vld [vmem:[%s1 + $0x14] sm:$0xf]
      %v297 = vld [vmem:[%s1 + $0x18] sm:$0xf]
      %v298 = vld [vmem:[%s1 + $0x1c] sm:$0xf]
      %v299 = vld [vmem:[%s1 + $0x20] sm:$0xf]
      %v300 = vld [vmem:[%s1 + $0x24] sm:$0xf]
      %v301 = vld [vmem:[%s1 + $0x28] sm:$0xf]
      %v302 = vld [vmem:[%s1 + $0x2c] sm:$0xf]
      %v303 = vld [vmem:[%s1 + $0x30] sm:$0xf]
      %v304 = vld [vmem:[%s1 + $0x34] sm:$0xf]
      %v305 = vld [vmem:[%s1 + $0x38] sm:$0xf]
      %v306 = vld [vmem:[%s1 + $0x3c] sm:$0xf]
      %v331 = vunpack.c.l.b16 %v267
      %v332 = vunpack.c.l.b16 %v268
      %v333 = vunpack.c.l.b16 %v269
      %v334 = vunpack.c.l.b16 %v270
      %v335 = vunpack.c.l.b16 %v271
      %v336 = vunpack.c.l.b16 %v272
      %v337 = vunpack.c.l.b16 %v273
      %v338 = vunpack.c.l.b16 %v274
      %v339 = vunpack.c.l.b16 %v275
      %v340 = vunpack.c.l.b16 %v276
      %v341 = vunpack.c.l.b16 %v277
      %v342 = vunpack.c.l.b16 %v278
      %v343 = vunpack.c.l.b16 %v279
      %v344 = vunpack.c.l.b16 %v280
      %v345 = vunpack.c.l.b16 %v281
      %v346 = vunpack.c.l.b16 %v282
      %v347 = vunpack.c.l.b16 %v283
      %v348 = vunpack.c.l.b16 %v284
      %v349 = vunpack.c.l.b16 %v285
      %v350 = vunpack.c.l.b16 %v286
      %v351 = vunpack.c.l.b16 %v287
      %v352 = vunpack.c.l.b16 %v288
      %v353 = vunpack.c.l.b16 %v289
      %v354 = vunpack.c.l.b16 %v290
      %v355 = vpack.c.b16 %v332, %v331
      %v356 = vpack.c.b16 %v334, %v333
      %v357 = vpack.c.b16 %v336, %v335
      %v358 = vpack.c.b16 %v338, %v337
      %v359 = vpack.c.b16 %v340, %v339
      %v360 = vpack.c.b16 %v342, %v341
      %v361 = vpack.c.b16 %v344, %v343
      %v362 = vpack.c.b16 %v346, %v345
      %v363 = vpack.c.b16 %v348, %v347
      %v364 = vpack.c.b16 %v350, %v349
      %v365 = vpack.c.b16 %v352, %v351
      %v366 = vpack.c.b16 %v354, %v353
      %v395 = vunpack.c.l.b16 %v291
      %v396 = vunpack.c.l.b16 %v292
      %v397 = vunpack.c.l.b16 %v293
      %v398 = vunpack.c.l.b16 %v294
      %v399 = vunpack.c.l.b16 %v295
      %v400 = vunpack.c.l.b16 %v296
      %v401 = vunpack.c.l.b16 %v297
      %v402 = vunpack.c.l.b16 %v298
      %v403 = vunpack.c.l.b16 %v299
      %v404 = vunpack.c.l.b16 %v300
      %v405 = vunpack.c.l.b16 %v301
      %v406 = vunpack.c.l.b16 %v302
      %v407 = vunpack.c.l.b16 %v303
      %v408 = vunpack.c.l.b16 %v304
      %v409 = vunpack.c.l.b16 %v305
      %v410 = vunpack.c.l.b16 %v306
      %v411 = vpack.c.b16 %v396, %v395
      %v412 = vpack.c.b16 %v398, %v397
      %v413 = vpack.c.b16 %v400, %v399
      %v414 = vpack.c.b16 %v402, %v401
      %v415 = vpack.c.b16 %v404, %v403
      %v416 = vpack.c.b16 %v406, %v405
      %v417 = vpack.c.b16 %v408, %v407
      %v418 = vpack.c.b16 %v410, %v409
      %427 = vmatprep.subr.bf16.mxu0 0
      %428 = vmatpush1.bf16.msra.mxu0 %v411
      %429 = vmatprep.subr.bf16.mxu0 0
      %430 = vmatpush1.bf16.msra.mxu0 %v412
      %431 = vmatprep.subr.bf16.mxu0 0
      %432 = vmatpush1.bf16.msra.mxu0 %v413
      %433 = vmatprep.subr.bf16.mxu0 0
      %434 = vmatpush1.bf16.msra.mxu0 %v414
      %435 = vmatprep.subr.bf16.mxu0 0
      %436 = vmatpush1.bf16.msra.mxu0 %v415
      %437 = vmatprep.subr.bf16.mxu0 0
      %438 = vmatpush1.bf16.msra.mxu0 %v416
      %439 = vmatprep.subr.bf16.mxu0 0
      %440 = vmatpush1.bf16.msra.mxu0 %v417
      %441 = vmatprep.subr.bf16.mxu0 0
      %442 = vmatpush1.bf16.msra.mxu0 %v418
      %443 = vmatprep.subr.bf16.mxu0 0
      %444 = vmatpush1.bf16.msra.mxu0 0
      %445 = vmatprep.subr.bf16.mxu0 0
      %446 = vmatpush1.bf16.msra.mxu0 0
      %447 = vmatprep.subr.bf16.mxu0 0
      %448 = vmatpush1.bf16.msra.mxu0 0
      %449 = vmatprep.subr.bf16.mxu0 0
      %450 = vmatpush1.bf16.msra.mxu0 0
      %451 = vmatprep.subr.bf16.mxu0 0
      %452 = vmatpush1.bf16.msra.mxu0 0
      %453 = vmatprep.subr.bf16.mxu0 0
      %454 = vmatpush1.bf16.msra.mxu0 0
      %455 = vmatprep.subr.bf16.mxu0 0
      %456 = vmatpush1.bf16.msra.mxu0 0
      %457 = vmatprep.subr.bf16.mxu0 0
      %458 = vmatpush1.bf16.msra.mxu0 0
      %459 = vmatprep.mubr.bf16.mxu0 0
      %460 = vmatmul.mubr.bf16.gmra.mrb[0].mxu0 %v355
      %v461 = vpop.f32.mrb[0].mxu0
      %v462 = vadd.f32 0.0, %v461
      %v463 = vpop.f32.mrb[0].mxu0
      %v464 = vpop.f32.mrb[0].mxu0
      %v465 = vadd.f32 0.0, %v464
      %v466 = vpop.f32.mrb[0].mxu0
      %467 = vmatprep.mubr.bf16.mxu0 0
      %468 = vmatmul.mubr.bf16.gmra.mrb[0].mxu0 %v356
      %v469 = vpop.f32.mrb[0].mxu0
      %v470 = vadd.f32 0.0, %v469
      %v471 = vpop.f32.mrb[0].mxu0
      %v472 = vpop.f32.mrb[0].mxu0
      %v473 = vadd.f32 0.0, %v472
      %v474 = vpop.f32.mrb[0].mxu0
      %475 = vmatprep.mubr.bf16.mxu0 0
      %476 = vmatmul.mubr.bf16.gmra.mrb[0].mxu0 %v357
      %v477 = vpop.f32.mrb[0].mxu0
      %v478 = vadd.f32 0.0, %v477
      %v479 = vpop.f32.mrb[0].mxu0
      %v480 = vpop.f32.mrb[0].mxu0
      %v481 = vadd.f32 0.0, %v480
      %v482 = vpop.f32.mrb[0].mxu0
      %483 = vmatprep.mubr.bf16.mxu0 0
      %484 = vmatmul.mubr.bf16.gmra.mrb[0].mxu0 %v358
      %v485 = vpop.f32.mrb[0].mxu0
      %v486 = vadd.f32 0.0, %v485
      %v487 = vpop.f32.mrb[0].mxu0
      %v488 = vpop.f32.mrb[0].mxu0
      %v489 = vadd.f32 0.0, %v488
      %v490 = vpop.f32.mrb[0].mxu0
      %491 = vmatprep.mubr.bf16.mxu0 0
      %492 = vmatmul.mubr.bf16.gmra.mrb[0].mxu0 %v359
      %v493 = vpop.f32.mrb[0].mxu0
      %v494 = vadd.f32 0.0, %v493
      %v495 = vpop.f32.mrb[0].mxu0
      %v496 = vpop.f32.mrb[0].mxu0
      %v497 = vadd.f32 0.0, %v496
      %v498 = vpop.f32.mrb[0].mxu0
      %499 = vmatprep.mubr.bf16.mxu0 0
      %500 = vmatmul.mubr.bf16.gmra.mrb[0].mxu0 %v360
      %v501 = vpop.f32.mrb[0].mxu0
      %v502 = vadd.f32 0.0, %v501
      %v503 = vpop.f32.mrb[0].mxu0
      %v504 = vpop.f32.mrb[0].mxu0
      %v505 = vadd.f32 0.0, %v504
      %v506 = vpop.f32.mrb[0].mxu0
      %507 = vmatprep.mubr.bf16.mxu0 0
      %508 = vmatmul.mubr.bf16.gmra.mrb[0].mxu0 %v361
      %v509 = vpop.f32.mrb[0].mxu0
      %v510 = vadd.f32 0.0, %v509
      %v511 = vpop.f32.mrb[0].mxu0
      %v512 = vpop.f32.mrb[0].mxu0
      %v513 = vadd.f32 0.0, %v512
      %v514 = vpop.f32.mrb[0].mxu0
      %515 = vmatprep.mubr.bf16.mxu0 0
      %516 = vmatmul.mubr.bf16.gmra.mrb[0].mxu0 %v362
      %v517 = vpop.f32.mrb[0].mxu0
      %v518 = vadd.f32 0.0, %v517
      %v519 = vpop.f32.mrb[0].mxu0
      %v520 = vpop.f32.mrb[0].mxu0
      %v521 = vadd.f32 0.0, %v520
      %v522 = vpop.f32.mrb[0].mxu0
      %523 = vmatprep.mubr.bf16.mxu0 0
      %524 = vmatmul.mubr.bf16.gmra.mrb[0].mxu0 %v363
      %v525 = vpop.f32.mrb[0].mxu0
      %v526 = vadd.f32 0.0, %v525
      %v527 = vpop.f32.mrb[0].mxu0
      %v528 = vpop.f32.mrb[0].mxu0
      %v529 = vadd.f32 0.0, %v528
      %v530 = vpop.f32.mrb[0].mxu0
      %531 = vmatprep.mubr.bf16.mxu0 0
      %532 = vmatmul.mubr.bf16.gmra.mrb[0].mxu0 %v364
      %v533 = vpop.f32.mrb[0].mxu0
      %v534 = vadd.f32 0.0, %v533
      %v535 = vpop.f32.mrb[0].mxu0
      %v536 = vpop.f32.mrb[0].mxu0
      %v537 = vadd.f32 0.0, %v536
      %v538 = vpop.f32.mrb[0].mxu0
      %539 = vmatprep.mubr.bf16.mxu0 0
      %540 = vmatmul.mubr.bf16.gmra.mrb[0].mxu0 %v365
      %v541 = vpop.f32.mrb[0].mxu0
      %v542 = vadd.f32 0.0, %v541
      %v543 = vpop.f32.mrb[0].mxu0
      %v544 = vpop.f32.mrb[0].mxu0
      %v545 = vadd.f32 0.0, %v544
      %v546 = vpop.f32.mrb[0].mxu0
      %547 = vmatprep.mubr.bf16.mxu0 0
      %548 = vmatmul.mubr.bf16.gmra.mrb[0].mxu0 %v366
      %v549 = vpop.f32.mrb[0].mxu0
      %v550 = vadd.f32 0.0, %v549
      %v551 = vpop.f32.mrb[0].mxu0
      %v552 = vpop.f32.mrb[0].mxu0
      %v553 = vadd.f32 0.0, %v552
      %v554 = vpop.f32.mrb[0].mxu0
      %555 = vdwg.mxu0
      %v556 = vpack.c.bf16 %v465, %v462
      %v557 = vpack.c.bf16 %v473, %v470
      %v558 = vpack.c.bf16 %v481, %v478
      %v559 = vpack.c.bf16 %v489, %v486
      %v560 = vpack.c.bf16 %v497, %v494
      %v561 = vpack.c.bf16 %v505, %v502
      %v562 = vpack.c.bf16 %v513, %v510
      %v563 = vpack.c.bf16 %v521, %v518
      %v564 = vpack.c.bf16 %v529, %v526
      %v565 = vpack.c.bf16 %v537, %v534
      %v566 = vpack.c.bf16 %v545, %v542
      %v567 = vpack.c.bf16 %v553, %v550
      %568 = vst [vmem:[#allocation2] sm:$0xff] %v556
      %569 = vst [vmem:[#allocation2 + $0x8] sm:$0xff] %v557
      %570 = vst [vmem:[#allocation2 + $0x10] sm:$0xff] %v558
      %571 = vst [vmem:[#allocation2 + $0x18] sm:$0xff] %v559
      %572 = vst [vmem:[#allocation2 + $0x20] sm:$0xff] %v560
      %573 = vst [vmem:[#allocation2 + $0x28] sm:$0xff] %v561
      %574 = vst [vmem:[#allocation2 + $0x30] sm:$0xff] %v562
      %575 = vst [vmem:[#allocation2 + $0x38] sm:$0xff] %v563
      %576 = vst [vmem:[#allocation2 + $0x40] sm:$0xff] %v564
      %577 = vst [vmem:[#allocation2 + $0x48] sm:$0xff] %v565
      %578 = vst [vmem:[#allocation2 + $0x50] sm:$0xff] %v566
      %579 = vst [vmem:[#allocation2 + $0x58] sm:$0xff] %v567
      %s580 = scalar_lea.vmem %s1, 64
      %v581 = vld [vmem:[%s580] sm:$0xf]
      %v582 = vld [vmem:[%s580 + $0x4] sm:$0xf]
      %v583 = vld [vmem:[%s580 + $0x8] sm:$0xf]
      %v584 = vld [vmem:[%s580 + $0xc] sm:$0xf]
      %v585 = vld [vmem:[%s580 + $0x10] sm:$0xf]
      %v586 = vld [vmem:[%s580 + $0x14] sm:$0xf]
      %v587 = vld [vmem:[%s580 + $0x18] sm:$0xf]
      %v588 = vld [vmem:[%s580 + $0x1c] sm:$0xf]
      %v589 = vld [vmem:[%s580 + $0x20] sm:$0xf]
      %v590 = vld [vmem:[%s580 + $0x24] sm:$0xf]
      %v591 = vld [vmem:[%s580 + $0x28] sm:$0xf]
      %v592 = vld [vmem:[%s580 + $0x2c] sm:$0xf]
      %v593 = vld [vmem:[%s580 + $0x30] sm:$0xf]
      %v594 = vld [vmem:[%s580 + $0x34] sm:$0xf]
      %v595 = vld [vmem:[%s580 + $0x38] sm:$0xf]
      %v596 = vld [vmem:[%s580 + $0x3c] sm:$0xf]
      %v613 = vunpack.c.l.b16 %v581
      %v614 = vunpack.c.l.b16 %v582
      %v615 = vunpack.c.l.b16 %v583
      %v616 = vunpack.c.l.b16 %v584
      %v617 = vunpack.c.l.b16 %v585
      %v618 = vunpack.c.l.b16 %v586
      %v619 = vunpack.c.l.b16 %v587
      %v620 = vunpack.c.l.b16 %v588
      %v621 = vunpack.c.l.b16 %v589
      %v622 = vunpack.c.l.b16 %v590
      %v623 = vunpack.c.l.b16 %v591
      %v624 = vunpack.c.l.b16 %v592
      %v625 = vunpack.c.l.b16 %v593
      %v626 = vunpack.c.l.b16 %v594
      %v627 = vunpack.c.l.b16 %v595
      %v628 = vunpack.c.l.b16 %v596
      %v629 = vpack.c.b16 %v614, %v613
      %v630 = vpack.c.b16 %v616, %v615
      %v631 = vpack.c.b16 %v618, %v617
      %v632 = vpack.c.b16 %v620, %v619
      %v633 = vpack.c.b16 %v622, %v621
      %v634 = vpack.c.b16 %v624, %v623
      %v635 = vpack.c.b16 %v626, %v625
      %v636 = vpack.c.b16 %v628, %v627
      %645 = vmatprep.subr.bf16.mxu0 0
      %646 = vmatpush1.bf16.msra.mxu0 %v629
      %647 = vmatprep.subr.bf16.mxu0 0
      %648 = vmatpush1.bf16.msra.mxu0 %v630
      %649 = vmatprep.subr.bf16.mxu0 0
      %650 = vmatpush1.bf16.msra.mxu0 %v631
      %651 = vmatprep.subr.bf16.mxu0 0
      %652 = vmatpush1.bf16.msra.mxu0 %v632
      %653 = vmatprep.subr.bf16.mxu0 0
      %654 = vmatpush1.bf16.msra.mxu0 %v633
      %655 = vmatprep.subr.bf16.mxu0 0
      %656 = vmatpush1.bf16.msra.mxu0 %v634
      %657 = vmatprep.subr.bf16.mxu0 0
      %658 = vmatpush1.bf16.msra.mxu0 %v635
      %659 = vmatprep.subr.bf16.mxu0 0
      %660 = vmatpush1.bf16.msra.mxu0 %v636
      %661 = vmatprep.subr.bf16.mxu0 0
      %662 = vmatpush1.bf16.msra.mxu0 0
      %663 = vmatprep.subr.bf16.mxu0 0
      %664 = vmatpush1.bf16.msra.mxu0 0
      %665 = vmatprep.subr.bf16.mxu0 0
      %666 = vmatpush1.bf16.msra.mxu0 0
      %667 = vmatprep.subr.bf16.mxu0 0
      %668 = vmatpush1.bf16.msra.mxu0 0
      %669 = vmatprep.subr.bf16.mxu0 0
      %670 = vmatpush1.bf16.msra.mxu0 0
      %671 = vmatprep.subr.bf16.mxu0 0
      %672 = vmatpush1.bf16.msra.mxu0 0
      %673 = vmatprep.subr.bf16.mxu0 0
      %674 = vmatpush1.bf16.msra.mxu0 0
      %675 = vmatprep.subr.bf16.mxu0 0
      %676 = vmatpush1.bf16.msra.mxu0 0
      %677 = vmatprep.mubr.bf16.mxu0 0
      %678 = vmatmul.mubr.bf16.gmra.mrb[0].mxu0 %v355
      %v679 = vpop.f32.mrb[0].mxu0
      %v680 = vadd.f32 0.0, %v679
      %v681 = vpop.f32.mrb[0].mxu0
      %v682 = vpop.f32.mrb[0].mxu0
      %v683 = vadd.f32 0.0, %v682
      %v684 = vpop.f32.mrb[0].mxu0
      %685 = vmatprep.mubr.bf16.mxu0 0
      %686 = vmatmul.mubr.bf16.gmra.mrb[0].mxu0 %v356
      %v687 = vpop.f32.mrb[0].mxu0
      %v688 = vadd.f32 0.0, %v687
      %v689 = vpop.f32.mrb[0].mxu0
      %v690 = vpop.f32.mrb[0].mxu0
      %v691 = vadd.f32 0.0, %v690
      %v692 = vpop.f32.mrb[0].mxu0
      %693 = vmatprep.mubr.bf16.mxu0 0
      %694 = vmatmul.mubr.bf16.gmra.mrb[0].mxu0 %v357
      %v695 = vpop.f32.mrb[0].mxu0
      %v696 = vadd.f32 0.0, %v695
      %v697 = vpop.f32.mrb[0].mxu0
      %v698 = vpop.f32.mrb[0].mxu0
      %v699 = vadd.f32 0.0, %v698
      %v700 = vpop.f32.mrb[0].mxu0
      %701 = vmatprep.mubr.bf16.mxu0 0
      %702 = vmatmul.mubr.bf16.gmra.mrb[0].mxu0 %v358
      %v703 = vpop.f32.mrb[0].mxu0
      %v704 = vadd.f32 0.0, %v703
      %v705 = vpop.f32.mrb[0].mxu0
      %v706 = vpop.f32.mrb[0].mxu0
      %v707 = vadd.f32 0.0, %v706
      %v708 = vpop.f32.mrb[0].mxu0
      %709 = vmatprep.mubr.bf16.mxu0 0
      %710 = vmatmul.mubr.bf16.gmra.mrb[0].mxu0 %v359
      %v711 = vpop.f32.mrb[0].mxu0
      %v712 = vadd.f32 0.0, %v711
      %v713 = vpop.f32.mrb[0].mxu0
      %v714 = vpop.f32.mrb[0].mxu0
      %v715 = vadd.f32 0.0, %v714
      %v716 = vpop.f32.mrb[0].mxu0
      %717 = vmatprep.mubr.bf16.mxu0 0
      %718 = vmatmul.mubr.bf16.gmra.mrb[0].mxu0 %v360
      %v719 = vpop.f32.mrb[0].mxu0
      %v720 = vadd.f32 0.0, %v719
      %v721 = vpop.f32.mrb[0].mxu0
      %v722 = vpop.f32.mrb[0].mxu0
      %v723 = vadd.f32 0.0, %v722
      %v724 = vpop.f32.mrb[0].mxu0
      %725 = vmatprep.mubr.bf16.mxu0 0
      %726 = vmatmul.mubr.bf16.gmra.mrb[0].mxu0 %v361
      %v727 = vpop.f32.mrb[0].mxu0
      %v728 = vadd.f32 0.0, %v727
      %v729 = vpop.f32.mrb[0].mxu0
      %v730 = vpop.f32.mrb[0].mxu0
      %v731 = vadd.f32 0.0, %v730
      %v732 = vpop.f32.mrb[0].mxu0
      %733 = vmatprep.mubr.bf16.mxu0 0
      %734 = vmatmul.mubr.bf16.gmra.mrb[0].mxu0 %v362
      %v735 = vpop.f32.mrb[0].mxu0
      %v736 = vadd.f32 0.0, %v735
      %v737 = vpop.f32.mrb[0].mxu0
      %v738 = vpop.f32.mrb[0].mxu0
      %v739 = vadd.f32 0.0, %v738
      %v740 = vpop.f32.mrb[0].mxu0
      %741 = vmatprep.mubr.bf16.mxu0 0
      %742 = vmatmul.mubr.bf16.gmra.mrb[0].mxu0 %v363
      %v743 = vpop.f32.mrb[0].mxu0
      %v744 = vadd.f32 0.0, %v743
      %v745 = vpop.f32.mrb[0].mxu0
      %v746 = vpop.f32.mrb[0].mxu0
      %v747 = vadd.f32 0.0, %v746
      %v748 = vpop.f32.mrb[0].mxu0
      %749 = vmatprep.mubr.bf16.mxu0 0
      %750 = vmatmul.mubr.bf16.gmra.mrb[0].mxu0 %v364
      %v751 = vpop.f32.mrb[0].mxu0
      %v752 = vadd.f32 0.0, %v751
      %v753 = vpop.f32.mrb[0].mxu0
      %v754 = vpop.f32.mrb[0].mxu0
      %v755 = vadd.f32 0.0, %v754
      %v756 = vpop.f32.mrb[0].mxu0
      %757 = vmatprep.mubr.bf16.mxu0 0
      %758 = vmatmul.mubr.bf16.gmra.mrb[0].mxu0 %v365
      %v759 = vpop.f32.mrb[0].mxu0
      %v760 = vadd.f32 0.0, %v759
      %v761 = vpop.f32.mrb[0].mxu0
      %v762 = vpop.f32.mrb[0].mxu0
      %v763 = vadd.f32 0.0, %v762
      %v764 = vpop.f32.mrb[0].mxu0
      %765 = vmatprep.mubr.bf16.mxu0 0
      %766 = vmatmul.mubr.bf16.gmra.mrb[0].mxu0 %v366
      %v767 = vpop.f32.mrb[0].mxu0
      %v768 = vadd.f32 0.0, %v767
      %v769 = vpop.f32.mrb[0].mxu0
      %v770 = vpop.f32.mrb[0].mxu0
      %v771 = vadd.f32 0.0, %v770
      %v772 = vpop.f32.mrb[0].mxu0
      %773 = vdwg.mxu0
      %v774 = vpack.c.bf16 %v683, %v680
      %v775 = vpack.c.bf16 %v691, %v688
      %v776 = vpack.c.bf16 %v699, %v696
      %v777 = vpack.c.bf16 %v707, %v704
      %v778 = vpack.c.bf16 %v715, %v712
      %v779 = vpack.c.bf16 %v723, %v720
      %v780 = vpack.c.bf16 %v731, %v728
      %v781 = vpack.c.bf16 %v739, %v736
      %v782 = vpack.c.bf16 %v747, %v744
      %v783 = vpack.c.bf16 %v755, %v752
      %v784 = vpack.c.bf16 %v763, %v760
      %v785 = vpack.c.bf16 %v771, %v768
      %s786 = scalar_lea.vmem [#allocation2], 96
      %787 = vst [vmem:[%s786] sm:$0xff] %v774
      %788 = vst [vmem:[%s786 + $0x8] sm:$0xff] %v775
      %789 = vst [vmem:[%s786 + $0x10] sm:$0xff] %v776
      %790 = vst [vmem:[%s786 + $0x18] sm:$0xff] %v777
      %791 = vst [vmem:[%s786 + $0x20] sm:$0xff] %v778
      %792 = vst [vmem:[%s786 + $0x28] sm:$0xff] %v779
      %793 = vst [vmem:[%s786 + $0x30] sm:$0xff] %v780
      %794 = vst [vmem:[%s786 + $0x38] sm:$0xff] %v781
      %795 = vst [vmem:[%s786 + $0x40] sm:$0xff] %v782
      %796 = vst [vmem:[%s786 + $0x48] sm:$0xff] %v783
      %797 = vst [vmem:[%s786 + $0x50] sm:$0xff] %v784
      %798 = vst [vmem:[%s786 + $0x58] sm:$0xff] %v785
      %s799 = scalar_lea.vmem %s1, 128
      %v800 = vld [vmem:[%s799] sm:$0xf]
      %v801 = vld [vmem:[%s799 + $0x4] sm:$0xf]
      %v802 = vld [vmem:[%s799 + $0x8] sm:$0xf]
      %v803 = vld [vmem:[%s799 + $0xc] sm:$0xf]
      %v804 = vld [vmem:[%s799 + $0x10] sm:$0xf]
      %v805 = vld [vmem:[%s799 + $0x14] sm:$0xf]
      %v806 = vld [vmem:[%s799 + $0x18] sm:$0xf]
      %v807 = vld [vmem:[%s799 + $0x1c] sm:$0xf]
      %v808 = vld [vmem:[%s799 + $0x20] sm:$0xf]
      %v809 = vld [vmem:[%s799 + $0x24] sm:$0xf]
      %v810 = vld [vmem:[%s799 + $0x28] sm:$0xf]
      %v811 = vld [vmem:[%s799 + $0x2c] sm:$0xf]
      %v812 = vld [vmem:[%s799 + $0x30] sm:$0xf]
      %v813 = vld [vmem:[%s799 + $0x34] sm:$0xf]
      %v814 = vld [vmem:[%s799 + $0x38] sm:$0xf]
      %v815 = vld [vmem:[%s799 + $0x3c] sm:$0xf]
      %v832 = vunpack.c.l.b16 %v800
      %v833 = vunpack.c.l.b16 %v801
      %v834 = vunpack.c.l.b16 %v802
      %v835 = vunpack.c.l.b16 %v803
      %v836 = vunpack.c.l.b16 %v804
      %v837 = vunpack.c.l.b16 %v805
      %v838 = vunpack.c.l.b16 %v806
      %v839 = vunpack.c.l.b16 %v807
      %v840 = vunpack.c.l.b16 %v808
      %v841 = vunpack.c.l.b16 %v809
      %v842 = vunpack.c.l.b16 %v810
      %v843 = vunpack.c.l.b16 %v811
      %v844 = vunpack.c.l.b16 %v812
      %v845 = vunpack.c.l.b16 %v813
      %v846 = vunpack.c.l.b16 %v814
      %v847 = vunpack.c.l.b16 %v815
      %v848 = vpack.c.b16 %v833, %v832
      %v849 = vpack.c.b16 %v835, %v834
      %v850 = vpack.c.b16 %v837, %v836
      %v851 = vpack.c.b16 %v839, %v838
      %v852 = vpack.c.b16 %v841, %v840
      %v853 = vpack.c.b16 %v843, %v842
      %v854 = vpack.c.b16 %v845, %v844
      %v855 = vpack.c.b16 %v847, %v846
      %864 = vmatprep.subr.bf16.mxu0 0
      %865 = vmatpush1.bf16.msra.mxu0 %v848
      %866 = vmatprep.subr.bf16.mxu0 0
      %867 = vmatpush1.bf16.msra.mxu0 %v849
      %868 = vmatprep.subr.bf16.mxu0 0
      %869 = vmatpush1.bf16.msra.mxu0 %v850
      %870 = vmatprep.subr.bf16.mxu0 0
      %871 = vmatpush1.bf16.msra.mxu0 %v851
      %872 = vmatprep.subr.bf16.mxu0 0
      %873 = vmatpush1.bf16.msra.mxu0 %v852
      %874 = vmatprep.subr.bf16.mxu0 0
      %875 = vmatpush1.bf16.msra.mxu0 %v853
      %876 = vmatprep.subr.bf16.mxu0 0
      %877 = vmatpush1.bf16.msra.mxu0 %v854
      %878 = vmatprep.subr.bf16.mxu0 0
      %879 = vmatpush1.bf16.msra.mxu0 %v855
      %880 = vmatprep.subr.bf16.mxu0 0
      %881 = vmatpush1.bf16.msra.mxu0 0
      %882 = vmatprep.subr.bf16.mxu0 0
      %883 = vmatpush1.bf16.msra.mxu0 0
      %884 = vmatprep.subr.bf16.mxu0 0
      %885 = vmatpush1.bf16.msra.mxu0 0
      %886 = vmatprep.subr.bf16.mxu0 0
      %887 = vmatpush1.bf16.msra.mxu0 0
      %888 = vmatprep.subr.bf16.mxu0 0
      %889 = vmatpush1.bf16.msra.mxu0 0
      %890 = vmatprep.subr.bf16.mxu0 0
      %891 = vmatpush1.bf16.msra.mxu0 0
      %892 = vmatprep.subr.bf16.mxu0 0
      %893 = vmatpush1.bf16.msra.mxu0 0
      %894 = vmatprep.subr.bf16.mxu0 0
      %895 = vmatpush1.bf16.msra.mxu0 0
      %896 = vmatprep.mubr.bf16.mxu0 0
      %897 = vmatmul.mubr.bf16.gmra.mrb[0].mxu0 %v355
      %v898 = vpop.f32.mrb[0].mxu0
      %v899 = vadd.f32 0.0, %v898
      %v900 = vpop.f32.mrb[0].mxu0
      %v901 = vpop.f32.mrb[0].mxu0
      %v902 = vadd.f32 0.0, %v901
      %v903 = vpop.f32.mrb[0].mxu0
      %904 = vmatprep.mubr.bf16.mxu0 0
      %905 = vmatmul.mubr.bf16.gmra.mrb[0].mxu0 %v356
      %v906 = vpop.f32.mrb[0].mxu0
      %v907 = vadd.f32 0.0, %v906
      %v908 = vpop.f32.mrb[0].mxu0
      %v909 = vpop.f32.mrb[0].mxu0
      %v910 = vadd.f32 0.0, %v909
      %v911 = vpop.f32.mrb[0].mxu0
      %912 = vmatprep.mubr.bf16.mxu0 0
      %913 = vmatmul.mubr.bf16.gmra.mrb[0].mxu0 %v357
      %v914 = vpop.f32.mrb[0].mxu0
      %v915 = vadd.f32 0.0, %v914
      %v916 = vpop.f32.mrb[0].mxu0
      %v917 = vpop.f32.mrb[0].mxu0
      %v918 = vadd.f32 0.0, %v917
      %v919 = vpop.f32.mrb[0].mxu0
      %920 = vmatprep.mubr.bf16.mxu0 0
      %921 = vmatmul.mubr.bf16.gmra.mrb[0].mxu0 %v358
      %v922 = vpop.f32.mrb[0].mxu0
      %v923 = vadd.f32 0.0, %v922
      %v924 = vpop.f32.mrb[0].mxu0
      %v925 = vpop.f32.mrb[0].mxu0
      %v926 = vadd.f32 0.0, %v925
      %v927 = vpop.f32.mrb[0].mxu0
      %928 = vmatprep.mubr.bf16.mxu0 0
      %929 = vmatmul.mubr.bf16.gmra.mrb[0].mxu0 %v359
      %v930 = vpop.f32.mrb[0].mxu0
      %v931 = vadd.f32 0.0, %v930
      %v932 = vpop.f32.mrb[0].mxu0
      %v933 = vpop.f32.mrb[0].mxu0
      %v934 = vadd.f32 0.0, %v933
      %v935 = vpop.f32.mrb[0].mxu0
      %936 = vmatprep.mubr.bf16.mxu0 0
      %937 = vmatmul.mubr.bf16.gmra.mrb[0].mxu0 %v360
      %v938 = vpop.f32.mrb[0].mxu0
      %v939 = vadd.f32 0.0, %v938
      %v940 = vpop.f32.mrb[0].mxu0
      %v941 = vpop.f32.mrb[0].mxu0
      %v942 = vadd.f32 0.0, %v941
      %v943 = vpop.f32.mrb[0].mxu0
      %944 = vmatprep.mubr.bf16.mxu0 0
      %945 = vmatmul.mubr.bf16.gmra.mrb[0].mxu0 %v361
      %v946 = vpop.f32.mrb[0].mxu0
      %v947 = vadd.f32 0.0, %v946
      %v948 = vpop.f32.mrb[0].mxu0
      %v949 = vpop.f32.mrb[0].mxu0
      %v950 = vadd.f32 0.0, %v949
      %v951 = vpop.f32.mrb[0].mxu0
      %952 = vmatprep.mubr.bf16.mxu0 0
      %953 = vmatmul.mubr.bf16.gmra.mrb[0].mxu0 %v362
      %v954 = vpop.f32.mrb[0].mxu0
      %v955 = vadd.f32 0.0, %v954
      %v956 = vpop.f32.mrb[0].mxu0
      %v957 = vpop.f32.mrb[0].mxu0
      %v958 = vadd.f32 0.0, %v957
      %v959 = vpop.f32.mrb[0].mxu0
      %960 = vmatprep.mubr.bf16.mxu0 0
      %961 = vmatmul.mubr.bf16.gmra.mrb[0].mxu0 %v363
      %v962 = vpop.f32.mrb[0].mxu0
      %v963 = vadd.f32 0.0, %v962
      %v964 = vpop.f32.mrb[0].mxu0
      %v965 = vpop.f32.mrb[0].mxu0
      %v966 = vadd.f32 0.0, %v965
      %v967 = vpop.f32.mrb[0].mxu0
      %968 = vmatprep.mubr.bf16.mxu0 0
      %969 = vmatmul.mubr.bf16.gmra.mrb[0].mxu0 %v364
      %v970 = vpop.f32.mrb[0].mxu0
      %v971 = vadd.f32 0.0, %v970
      %v972 = vpop.f32.mrb[0].mxu0
      %v973 = vpop.f32.mrb[0].mxu0
      %v974 = vadd.f32 0.0, %v973
      %v975 = vpop.f32.mrb[0].mxu0
      %976 = vmatprep.mubr.bf16.mxu0 0
      %977 = vmatmul.mubr.bf16.gmra.mrb[0].mxu0 %v365
      %v978 = vpop.f32.mrb[0].mxu0
      %v979 = vadd.f32 0.0, %v978
      %v980 = vpop.f32.mrb[0].mxu0
      %v981 = vpop.f32.mrb[0].mxu0
      %v982 = vadd.f32 0.0, %v981
      %v983 = vpop.f32.mrb[0].mxu0
      %984 = vmatprep.mubr.bf16.mxu0 0
      %985 = vmatmul.mubr.bf16.gmra.mrb[0].mxu0 %v366
      %v986 = vpop.f32.mrb[0].mxu0
      %v987 = vadd.f32 0.0, %v986
      %v988 = vpop.f32.mrb[0].mxu0
      %v989 = vpop.f32.mrb[0].mxu0
      %v990 = vadd.f32 0.0, %v989
      %v991 = vpop.f32.mrb[0].mxu0
      %992 = vdwg.mxu0
      %v993 = vpack.c.bf16 %v902, %v899
      %v994 = vpack.c.bf16 %v910, %v907
      %v995 = vpack.c.bf16 %v918, %v915
      %v996 = vpack.c.bf16 %v926, %v923
      %v997 = vpack.c.bf16 %v934, %v931
      %v998 = vpack.c.bf16 %v942, %v939
      %v999 = vpack.c.bf16 %v950, %v947
      %v1000 = vpack.c.bf16 %v958, %v955
      %v1001 = vpack.c.bf16 %v966, %v963
      %v1002 = vpack.c.bf16 %v974, %v971
      %v1003 = vpack.c.bf16 %v982, %v979
      %v1004 = vpack.c.bf16 %v990, %v987
      %s1005 = scalar_lea.vmem [#allocation2], 192
      %1006 = vst [vmem:[%s1005] sm:$0xff] %v993
      %1007 = vst [vmem:[%s1005 + $0x8] sm:$0xff] %v994
      %1008 = vst [vmem:[%s1005 + $0x10] sm:$0xff] %v995
      %1009 = vst [vmem:[%s1005 + $0x18] sm:$0xff] %v996
      %1010 = vst [vmem:[%s1005 + $0x20] sm:$0xff] %v997
      %1011 = vst [vmem:[%s1005 + $0x28] sm:$0xff] %v998
      %1012 = vst [vmem:[%s1005 + $0x30] sm:$0xff] %v999
      %1013 = vst [vmem:[%s1005 + $0x38] sm:$0xff] %v1000
      %1014 = vst [vmem:[%s1005 + $0x40] sm:$0xff] %v1001
      %1015 = vst [vmem:[%s1005 + $0x48] sm:$0xff] %v1002
      %1016 = vst [vmem:[%s1005 + $0x50] sm:$0xff] %v1003
      %1017 = vst [vmem:[%s1005 + $0x58] sm:$0xff] %v1004
      loop: start=0, step=1, limit=12
      $region41: #{_lambda_.1} parent=39 // loop_pre_header
        _
      $region42: #{_lambda_.1} parent=39 // loop_header
        %s1019 = sphi 0, %s1023
        %p1020 = scmp.ge.s32.totalorder %s1019, 12
      $region43: #{_lambda_.1} parent=39 // loop_header_branch
        %1022 = sbr.rel (%p1020) target = $region47
      $region44: #{_lambda_.1} parent=39 // loop_body
        %s1024 = sadd.s32 %s249, %s1019
        %s1025 = smul.u32 %s1024, 16
        %s1026 = smul.u32 %s1019, 16
        %s1027 = sshra.s32 %s1025, 3
        %s1028 = sand.u32 %s1025, 7
        %s1029 = smul.addr %s1027, 4
        %s1030 = scalar_lea.vmem %s237, %s1029
        %v1031 = vld [vmem:[%s1030] sm:$0xf]
        %v1032 = vld [vmem:[%s1030 + $0x4] sm:$0xf]
        %s1033 = sshra.s32 %s1026, 4
        %s1034 = sand.u32 %s1026, 15
        %s1035 = smul.addr %s1033, 8
        %s1036 = scalar_lea.vmem [#allocation2], %s1035
        %v1037 = vld [vmem:[%s1036] sm:$0xff]
        %s1038 = sadd.s32 %s1033, 12
        %s1039 = smul.addr %s1038, 8
        %s1040 = scalar_lea.vmem [#allocation2], %s1039
        %v1041 = vld [vmem:[%s1040] sm:$0xff]
        %s1042 = sadd.s32 %s1033, 24
        %s1043 = smul.addr %s1042, 8
        %s1044 = scalar_lea.vmem [#allocation2], %s1043
        %v1045 = vld [vmem:[%s1044] sm:$0xff]
        %v1048 = vunpack.c.l.b16 %v1031
        %v1049 = vunpack.c.l.b16 %v1032
        %v1050 = vpack.c.b16 %v1049, %v1048
        %vm1052 = vcmask 523264
        %v1054 = vsel %vm1052, %v250, 0
        %1056 = vmatprep.subr.bf16.mxu0 0
        %1057 = vmatpush1.bf16.msra.mxu0 %v1050
        %1058 = vmatprep.subr.bf16.mxu0 0
        %1059 = vmatpush1.bf16.msra.mxu0 %v1037
        %1060 = vmatprep.subr.bf16.mxu0 0
        %1061 = vmatpush1.bf16.msra.mxu0 %v1041
        %1062 = vmatprep.subr.bf16.mxu0 0
        %1063 = vmatpush1.bf16.msra.mxu0 %v1045
        %1064 = vmatprep.subr.bf16.mxu0 0
        %1065 = vmatpush1.bf16.msra.mxu0 0
        %1066 = vmatprep.subr.bf16.mxu0 0
        %1067 = vmatpush1.bf16.msra.mxu0 0
        %1068 = vmatprep.subr.bf16.mxu0 0
        %1069 = vmatpush1.bf16.msra.mxu0 0
        %1070 = vmatprep.subr.bf16.mxu0 0
        %1071 = vmatpush1.bf16.msra.mxu0 0
        %1072 = vmatprep.subr.bf16.mxu0 0
        %1073 = vmatpush1.bf16.msra.mxu0 0
        %1074 = vmatprep.subr.bf16.mxu0 0
        %1075 = vmatpush1.bf16.msra.mxu0 0
        %1076 = vmatprep.subr.bf16.mxu0 0
        %1077 = vmatpush1.bf16.msra.mxu0 0
        %1078 = vmatprep.subr.bf16.mxu0 0
        %1079 = vmatpush1.bf16.msra.mxu0 0
        %1080 = vmatprep.subr.bf16.mxu0 0
        %1081 = vmatpush1.bf16.msra.mxu0 0
        %1082 = vmatprep.subr.bf16.mxu0 0
        %1083 = vmatpush1.bf16.msra.mxu0 0
        %1084 = vmatprep.subr.bf16.mxu0 0
        %1085 = vmatpush1.bf16.msra.mxu0 0
        %1086 = vmatprep.subr.bf16.mxu0 0
        %1087 = vmatpush1.bf16.msra.mxu0 0
        %1088 = vmatprep.mubr.bf16.mxu0 0
        %1089 = vmatmul.mubr.bf16.gmra.mrb[0].mxu0 %v1054
        %v1090 = vpop.f32.mrb[0].mxu0
        %v1091 = vadd.f32 %v256, %v1090
        %v1092 = vpop.f32.mrb[0].mxu0
        %v1093 = vpop.f32.mrb[0].mxu0
        %v1094 = vpop.f32.mrb[0].mxu0
        %1095 = vdwg.mxu0
        %v1096 = vmax.f32 %v1091, 0.0
        %p1097 = scmp.ge.s32.totalorder %s1024, 2
        %p1098 = scmp.lt.s32.totalorder %s1024, 18
        %p1099 = pnand %p1097, %p1098
        %p1100 = pneg %p1099
        %s1101 = scalar_select %p1100, 1, 0
        %v1102 = vstv %s1101
        %vm1103 = vcmp.eq.s32.totalorder %v1102, 1
        %v1104 = vsel %vm1103, %v1096, 0.0
        %s1105 = smul.u32 %s1019, 8
        %s1106 = scalar_lea.vmem [#allocation3], %s1105
        %1107 = vst [vmem:[%s1106] sm:$0xff] %v1104
      $region45: #{_lambda_.1} parent=39 // loop_footer
        %s1023 = sadd.s32 1, %s1019
      $region46: #{_lambda_.1} parent=39 // loop_footer_branch
        %1018 = sbr.rel target = $region42
      $region47: #{_lambda_.1} parent=39 // loop_exit
        _
      loop: start=0, step=1, limit=8
      $region48: #{_lambda_.1} parent=39 // loop_pre_header
        _
      $region49: #{_lambda_.1} parent=39 // loop_header
        %s1109 = sphi 0, %s1113
        %p1110 = scmp.ge.s32.totalorder %s1109, 8
      $region50: #{_lambda_.1} parent=39 // loop_header_branch
        %1112 = sbr.rel (%p1110) target = $region54
      $region51: #{_lambda_.1} parent=39 // loop_body
        %s1114 = smul.u32 %s1109, 8
        %s1115 = scalar_lea.vmem [#allocation3], %s1114
        %v1116 = vld [vmem:[%s1115] sm:$0xff]
        %v1117 = vld [vmem:[%s1115 + $0x8] sm:$0xff]
        %v1118 = vld [vmem:[%s1115 + $0x10] sm:$0xff]
        %v1119 = vld [vmem:[%s1115 + $0x18] sm:$0xff]
        %v1120 = vld [vmem:[%s1115 + $0x20] sm:$0xff]
        %v1121 = vpack.c.bf16 %v1117, %v1116
        %v1122 = vpack.c.bf16 %v1119, %v1118
        %v1123 = vpack.c.bf16 %v1120, %v1120
        %s1124 = sadd.s32 %s249, 2
        %s1125 = sadd.s32 %s1124, %s1109
        %s1126 = smul.u32 %s1125, 16
        %s1127 = sshra.s32 %s1126, 3
        %s1128 = sand.u32 %s1126, 7
        %s1129 = smul.addr %s1127, 4
        %s1130 = scalar_lea.vmem %s237, %s1129
        %v1131 = vld [vmem:[%s1130] sm:$0xf]
        %v1132 = vld [vmem:[%s1130 + $0x4] sm:$0xf]
        %v1135 = vunpack.c.l.b16 %v1131
        %v1136 = vunpack.c.l.b16 %v1132
        %v1137 = vpack.c.b16 %v1135, %v1135
        %v1138 = vpack.c.b16 %v1136, %v1136
        %vm1139 = vcmask 1043456
        %v1142 = vsel %vm1139, %v1123, %v1137
        %vm1144 = vcmask 457728
        %v1146 = vsel %vm1144, %v251, 0
        %v1149 = vsel %vm1139, %v1138, 0
        %1151 = vmatprep.subr.bf16.mxu0 0
        %1152 = vmatpush1.bf16.msra.mxu0 %v1121
        %1153 = vmatprep.subr.bf16.mxu0 0
        %1154 = vmatpush1.bf16.msra.mxu0 %v1122
        %1155 = vmatprep.subr.bf16.mxu0 0
        %1156 = vmatpush1.bf16.msra.mxu0 %v1142
        %1157 = vmatprep.subr.bf16.mxu0 0
        %1158 = vmatpush1.bf16.msra.mxu0 %v1149
        %1159 = vmatprep.subr.bf16.mxu0 0
        %1160 = vmatpush1.bf16.msra.mxu0 0
        %1161 = vmatprep.subr.bf16.mxu0 0
        %1162 = vmatpush1.bf16.msra.mxu0 0
        %1163 = vmatprep.subr.bf16.mxu0 0
        %1164 = vmatpush1.bf16.msra.mxu0 0
        %1165 = vmatprep.subr.bf16.mxu0 0
        %1166 = vmatpush1.bf16.msra.mxu0 0
        %1167 = vmatprep.subr.bf16.mxu0 0
        %1168 = vmatpush1.bf16.msra.mxu0 0
        %1169 = vmatprep.subr.bf16.mxu0 0
        %1170 = vmatpush1.bf16.msra.mxu0 0
        %1171 = vmatprep.subr.bf16.mxu0 0
        %1172 = vmatpush1.bf16.msra.mxu0 0
        %1173 = vmatprep.subr.bf16.mxu0 0
        %1174 = vmatpush1.bf16.msra.mxu0 0
        %1175 = vmatprep.subr.bf16.mxu0 0
        %1176 = vmatpush1.bf16.msra.mxu0 0
        %1177 = vmatprep.subr.bf16.mxu0 0
        %1178 = vmatpush1.bf16.msra.mxu0 0
        %1179 = vmatprep.subr.bf16.mxu0 0
        %1180 = vmatpush1.bf16.msra.mxu0 0
        %1181 = vmatprep.subr.bf16.mxu0 0
        %1182 = vmatpush1.bf16.msra.mxu0 0
        %1183 = vmatprep.mubr.bf16.mxu0 0
        %1184 = vmatmul.mubr.bf16.gmra.mrb[0].mxu0 %v1146
        %v1185 = vpop.f32.mrb[0].mxu0
        %v1186 = vadd.f32 %v260, %v1185
        %v1187 = vpop.f32.mrb[0].mxu0
        %v1188 = vpop.f32.mrb[0].mxu0
        %v1189 = vpop.f32.mrb[0].mxu0
        %1190 = vdwg.mxu0
        %v1191 = vmax.f32 %v1186, 0.0
        %v1192 = vpack.c.bf16 %v1191, %v1191
        %s1193 = sshra.s32 %s1114, 3
        %s1194 = sand.u32 %s1114, 7
        %s1195 = smul.addr %s1193, 4
        %s1196 = scalar_lea.vmem %s246, %s1195
        %1197 = vst [vmem:[%s1196] sm:$0xf] %v1192
      $region52: #{_lambda_.1} parent=39 // loop_footer
        %s1113 = sadd.s32 1, %s1109
      $region53: #{_lambda_.1} parent=39 // loop_footer_branch
        %1108 = sbr.rel target = $region49
      $region54: #{_lambda_.1} parent=39 // loop_exit
        _
      %s1198 = smul.u32 8, %s21
      %p1199 = scmp.lt.s32.totalorder %s20, 0
      %s1200 = scalar_select %p1199, %s20, 0
      %p1201 = scmp.lt.s32.totalorder %s1198, 15
      %s1202 = scalar_select %p1201, %s1198, 15
      %s1203 = smul.addr %s1200, 16
      %s1204 = sadd.s32 %s1202, %s1203
      %s1205 = smul.addr %s1204, 4
      %s1206 = scalar_lea.vmem %s5, %s1205
      // Predicated region
      $region55: #{_lambda_.1} parent=39 // pred_check
        %p1207 = pneg %p158
      $region56: #{_lambda_.1} parent=39 // pred_check_branch
        %1209 = sbr.rel (%p1207) target = $region58
      $region57: #{_lambda_.1} parent=39 // pred_region
        %s1210 = smul.u32 8, %s21
      $region58: #{_lambda_.1} parent=39 // pred_fallthru
        _
    $region40: #{_lambda_.1} parent=5 // pred_fallthru
      _
    %p1211 = scmp.le.s32.totalorder 2, %s11
    // Predicated region
    $region59: #{_lambda_.1} parent=5 // pred_check
      %p1212 = pneg %p1211
    $region60: #{_lambda_.1} parent=5 // pred_check_branch
      %1214 = sbr.rel (%p1212) target = $region62
    $region61: #{_lambda_.1} parent=5 // pred_region
      %s1215 = ssub.s32 %s11, 2
      // Predicated region
      $region63: #{_lambda_.1} parent=61 // pred_check
        %p1216 = pneg %p164
      $region64: #{_lambda_.1} parent=61 // pred_check_branch
        %1218 = sbr.rel (%p1216) target = $region66
      $region65: #{_lambda_.1} parent=61 // pred_region
        %s1219 = smul.u32 8, %s23
        %p1220 = scmp.lt.s32.totalorder %s22, 0
        %s1221 = scalar_select %p1220, %s22, 0
        %p1222 = scmp.lt.s32.totalorder %s1219, 15
        %s1223 = scalar_select %p1222, %s1219, 15
        %s1224 = smul.addr %s1221, 16
        %s1225 = sadd.s32 %s1223, %s1224
        %s1226 = smul.addr %s1225, 4
        %s1227 = scalar_lea.vmem %s5, %s1226
      $region66: #{_lambda_.1} parent=61 // pred_fallthru
        _
    $region62: #{_lambda_.1} parent=5 // pred_fallthru
      _
  $region6: #{_lambda_.1} parent=0 // loop_footer
    %s15 = sadd.s32 1, %s11
  $region7: #{_lambda_.1} parent=0 // loop_footer_branch
    %10 = sbr.rel target = $region3
  $region8: #{_lambda_.1} parent=0 // loop_exit
    _

</llo_original>
